<compile_context>
chip_gen: v7x
topology: tpu7x:2x2x1
jax: 0.10.0
libtpu: 0.0.40
codegen_flags: <defaults>
</compile_context>

<pallas_src>
import functools

import jax
import jax.numpy as jnp
from jax.experimental import pallas as pl
from jax.experimental.pallas import tpu as pltpu


def _make_residual_conv3x3_kernel(TH, W, C, has_halo, cmp_dtype):
    """Builds the fused conv3x3 + bias + residual kernel for one row tile."""
    M = TH * W

    def kernel(*refs):
        if has_halo:
            x_ref, top_ref, bot_ref, w_ref, b_ref, o_ref = refs
        else:
            x_ref, w_ref, b_ref, o_ref = refs

        xt = x_ref[0]                                        # (TH, W, C)

        if has_halo:
            j = pl.program_id(1)
            nj = pl.num_programs(1)
            # Halo rows are index-clamped at the image border by their
            # BlockSpecs; zero them there with a scalar 0/1 scale (cheap splat
            # + vmul, no pl.when/scratch round-trip).
            top = top_ref[0] * (j > 0).astype(xt.dtype)      # (1, W, C)
            bot = bot_ref[0] * (j < nj - 1).astype(xt.dtype)  # (1, W, C)
        else:
            top = jnp.zeros((1, W, C), xt.dtype)
            bot = jnp.zeros((1, W, C), xt.dtype)

        # All input rows this tile needs (implicit zero padding at the edges).
        rows = jnp.concatenate([top, xt, bot], axis=0).astype(cmp_dtype)

        # kw taps built ONCE per step (hoisted out of the kh loop; no padded
        # scratch slab, no misaligned interior stores).
        zcol = jnp.zeros((TH + 2, 1, C), cmp_dtype)
        left = jnp.concatenate([zcol, rows[:, :W - 1, :]], axis=1)   # x[., w-1]
        right = jnp.concatenate([rows[:, 1:, :], zcol], axis=1)      # x[., w+1]

        folded = jnp.concatenate([left, rows, right], axis=-1)       # (TH+2, W, 3C)
        folded = folded.reshape((TH + 2) * W, 3 * C)

        # 3 MXU matmuls (one per kh), K = 3C, chained f32 accumulation.
        acc = jnp.zeros((M, C), jnp.float32)
        for kh in range(3):
            lhs = folded[kh * W:kh * W + M, :]
            acc = acc + jnp.dot(lhs, w_ref[kh],
                                preferred_element_type=jnp.float32)

        acc = acc + b_ref[...]                               # bias, f32 (1, C)

        xres = xt.reshape(M, C)                              # residual path
        if o_ref.dtype == jnp.float32:
            o_ref[0] = (acc + xres).astype(o_ref.dtype)
        else:
            # Keep the residual add in the native dtype: no full-tile up-cast.
            o_ref[0] = acc.astype(o_ref.dtype) + xres

    return kernel


def _device_vmem_budget_bytes():
    """Per-TensorCore VMEM budget used for tiling and vmem_limit_bytes."""
    try:
        kind = jax.devices()[0].device_kind.lower()
    except Exception:  # pragma: no cover - defensive
        kind = ""
    if "v7" in kind:
        return 48 * 1024 * 1024       # 64 MiB physical per TC -> leave headroom
    if "v5" in kind or "v6" in kind:
        return 96 * 1024 * 1024       # 128 MiB physical
    return 48 * 1024 * 1024           # conservative default


def _vmem_estimate_bytes(TH, W, C, in_isz, cmp_isz):
    """Rough per-step working set (double-buffered I/O + in-kernel temps)."""
    m = TH * W
    slab = (TH + 2) * W * C
    est = 2 * m * C * in_isz           # input row tile (double-buffered)
    est += 2 * 2 * W * C * in_isz      # halo rows (double-buffered)
    est += 2 * 9 * C * C * cmp_isz     # weights (double-buffered)
    est += 2 * m * C * in_isz          # output tile (double-buffered)
    est += 3 * slab * cmp_isz          # rows / left / right temporaries
    est += 3 * slab * cmp_isz          # folded (.., 3C) slab
    est += m * C * 4                   # f32 accumulator
    return int(est * 1.25) + (2 << 20)  # margin for layout padding / misc


def _pick_block_h(N, H, W, C, in_isz, cmp_isz, budget):
    """Largest divisor of H whose working set fits the VMEM budget."""
    divisors = [d for d in range(H, 0, -1) if H % d == 0]
    fits = [d for d in divisors
            if _vmem_estimate_bytes(d, W, C, in_isz, cmp_isz) <= budget]
    block_h = fits[0] if fits else 1
    # Keep >= 2 independent grid steps so multi-TensorCore chips (v7x) and the
    # "parallel" dimension semantics have something to split.
    if N * (H // block_h) < 2:
        for d in fits:
            if d < block_h and d * W >= 128:
                block_h = d
                break
    return block_h


@functools.partial(jax.jit, static_argnames=("block_h", "mxu_dtype"))
def residual_conv(x_nchw, w_hwio, b, *, block_h=None, mxu_dtype=None):
    """x + Conv2d(C, C, 3, padding=1, bias)(x); PyTorch-style NCHW in/out.

    mxu_dtype: optional matmul-operand dtype (e.g. jnp.bfloat16 on v6e/v7x);
    accumulation stays f32 and the residual path stays in x.dtype.
    """
    N, C, H, W = x_nchw.shape
    cmp_dtype = jnp.dtype(mxu_dtype) if mxu_dtype is not None else x_nchw.dtype
    in_isz = x_nchw.dtype.itemsize
    cmp_isz = jnp.dtype(cmp_dtype).itemsize

    vmem_budget = _device_vmem_budget_bytes()
    if block_h is None:
        block_h = _pick_block_h(N, H, W, C, in_isz, cmp_isz, vmem_budget)
    assert H % block_h == 0, "block_h must divide H"
    num_h_tiles = H // block_h
    has_halo = num_h_tiles > 1

    # Layout glue only (kept to match the PyTorch NCHW API): NCHW -> NHWC.
    x = jnp.transpose(x_nchw, (0, 2, 3, 1))                   # (N, H, W, C)
    # (kh, kw, cin, cout) -> (kh, kw*C + cin, cout): matches the folded slab's
    # lane layout [x[w-1] | x[w] | x[w+1]].
    w_mat = w_hwio.reshape(3, 3 * C, C).astype(cmp_dtype)
    b2 = b.reshape(1, C).astype(jnp.float32)

    kernel = _make_residual_conv3x3_kernel(block_h, W, C, has_halo, cmp_dtype)

    in_specs = [pl.BlockSpec((1, block_h, W, C), lambda n, j: (n, j, 0, 0))]
    inputs = [x]
    if has_halo:
        # 1-row halos above / below the tile, index-clamped at the image edge
        # (the kernel zeroes them there).
        in_specs += [
            pl.BlockSpec((1, 1, W, C),
                         lambda n, j: (n, jnp.maximum(j * block_h - 1, 0), 0, 0)),
            pl.BlockSpec((1, 1, W, C),
                         lambda n, j: (n, jnp.minimum((j + 1) * block_h, H - 1),
                                       0, 0)),
        ]
        inputs += [x, x]
    in_specs += [
        pl.BlockSpec((3, 3 * C, C), lambda n, j: (0, 0, 0)),   # weights, resident
        pl.BlockSpec((1, C), lambda n, j: (0, 0)),             # bias, resident
    ]
    inputs += [w_mat, b2]

    cost = pl.CostEstimate(
        flops=2 * N * H * W * C * C * 9,
        transcendentals=0,
        bytes_accessed=(2 * N * H * W * C + 9 * C * C + C) * in_isz,
    )

    out_flat = pl.pallas_call(
        kernel,
        out_shape=jax.ShapeDtypeStruct((N, H * W, C), x.dtype),
        grid_spec=pltpu.PrefetchScalarGridSpec(
            num_scalar_prefetch=0,
            grid=(N, num_h_tiles),
            in_specs=in_specs,
            # Spatially flattened 2-D output tile; the (H, W) un-flatten and
            # NHWC->NCHW transpose happen only in the wrapper.
            out_specs=pl.BlockSpec((1, block_h * W, C), lambda n, j: (n, j, 0)),
        ),
        compiler_params=pltpu.CompilerParams(
            dimension_semantics=("parallel", "parallel"),
            vmem_limit_bytes=vmem_budget,
        ),
        cost_estimate=cost,
    )(*inputs)

    out = out_flat.reshape(N, H, W, C)
    return jnp.transpose(out, (0, 3, 1, 2))                    # back to NCHW


def _reference(x_nchw, w_hwio, b):
    """Pure-JAX reference: x + Conv2d(C, C, 3, padding=1)(x), NCHW."""
    x = jnp.transpose(x_nchw, (0, 2, 3, 1)).astype(jnp.float32)
    y = jax.lax.conv_general_dilated(
        x, w_hwio.astype(jnp.float32),
        window_strides=(1, 1), padding="SAME",
        dimension_numbers=("NHWC", "HWIO", "NHWC"),
        precision=jax.lax.Precision.HIGHEST,
    ) + b.astype(jnp.float32)
    out = x + y
    return jnp.transpose(out, (0, 3, 1, 2)).astype(x_nchw.dtype)


if __name__ == "__main__":
    key = jax.random.PRNGKey(0)
    k_x, k_w, k_b = jax.random.split(key, 3)

    N, C, H, W = 2, 4, 16, 16
    x = jax.random.normal(k_x, (N, C, H, W), dtype=jnp.float32)

    # Deterministic conv params (Conv2d(C, C, 3, padding=1)), HWIO layout.
    fan_in = C * 3 * 3
    w = jax.random.normal(k_w, (3, 3, C, C), dtype=jnp.float32) / jnp.sqrt(fan_in)
    b = jax.random.normal(k_b, (C,), dtype=jnp.float32) * 0.01

    ref = _reference(x, w, b)

    # Auto tile picker: block_h == H here -> single row tile, no halo DMAs.
    out = residual_conv(x, w, b)
    jax.block_until_ready(out)
    assert out.shape == x.shape and out.dtype == x.dtype
    assert jnp.allclose(out, ref, atol=2e-4, rtol=2e-4), "mismatch (auto tile)"

    # Explicit block_h=8 -> 2 row tiles per image: exercises the halo path
    # (interior + image-edge zero substitution).
    out_tiled = residual_conv(x, w, b, block_h=8)
    jax.block_until_ready(out_tiled)
    assert jnp.allclose(out_tiled, ref, atol=2e-4, rtol=2e-4), \
        "mismatch (halo tiles)"

    print("KERNEL_OK")
</pallas_src>

<mosaic_0001>
module attributes {stable_mosaic.version = 11 : i64} {
  func.func @kernel(%arg0: i32, %arg1: i32, %arg2: memref<1x16x16x4xf32, #tpu.memory_space<vmem>>, %arg3: memref<3x12x4xf32, #tpu.memory_space<vmem>>, %arg4: memref<1x4xf32, #tpu.memory_space<vmem>>, %arg5: memref<1x256x4xf32, #tpu.memory_space<vmem>>) attributes {dimension_semantics = [#tpu.dimension_semantics<parallel>, #tpu.dimension_semantics<parallel>], iteration_bounds = array<i64: 2, 1>, scalar_prefetch = 0 : i64, scratch_operands = 0 : i64, tpu.core_type = #tpu.core_type<tc>, window_params = [{transform_indices = @transform_0, window_bounds = array<i64: 1, 16, 16, 4>}, {pipeline_mode = #tpu.pipeline_mode<synchronous>, transform_indices = @transform_1, window_bounds = array<i64: 3, 12, 4>}, {pipeline_mode = #tpu.pipeline_mode<synchronous>, transform_indices = @transform_2, window_bounds = array<i64: 1, 4>}, {transform_indices = @transform_3, window_bounds = array<i64: 1, 256, 4>}]} {
    %c0 = arith.constant 0 : index
    %c0_0 = arith.constant 0 : index
    %c0_1 = arith.constant 0 : index
    %c0_2 = arith.constant 0 : index
    %0 = vector.load %arg2[%c0, %c0_0, %c0_1, %c0_2] : memref<1x16x16x4xf32, #tpu.memory_space<vmem>>, vector<1x16x16x4xf32>
    %1 = vector.shape_cast %0 : vector<1x16x16x4xf32> to vector<16x16x4xf32>
    %cst = arith.constant 0.000000e+00 : f32
    %2 = vector.broadcast %cst : f32 to vector<1x16x4xf32>
    %cst_3 = arith.constant 0.000000e+00 : f32
    %3 = vector.broadcast %cst_3 : f32 to vector<1x16x4xf32>
    %4 = tpu.concatenate %2, %1, %3 in 0 : vector<1x16x4xf32>, vector<16x16x4xf32>, vector<1x16x4xf32> -> vector<18x16x4xf32>
    %cst_4 = arith.constant 0.000000e+00 : f32
    %5 = vector.broadcast %cst_4 : f32 to vector<18x1x4xf32>
    %6 = vector.extract_strided_slice %4 {offsets = [0, 0, 0], sizes = [18, 15, 4], strides = [1, 1, 1]} : vector<18x16x4xf32> to vector<18x15x4xf32>
    %7 = tpu.concatenate %5, %6 in 1 : vector<18x1x4xf32>, vector<18x15x4xf32> -> vector<18x16x4xf32>
    %8 = vector.extract_strided_slice %4 {offsets = [0, 1, 0], sizes = [18, 15, 4], strides = [1, 1, 1]} : vector<18x16x4xf32> to vector<18x15x4xf32>
    %9 = tpu.concatenate %8, %5 in 1 : vector<18x15x4xf32>, vector<18x1x4xf32> -> vector<18x16x4xf32>
    %10 = tpu.concatenate %7, %4, %9 in 2 : vector<18x16x4xf32>, vector<18x16x4xf32>, vector<18x16x4xf32> -> vector<18x16x12xf32>
    %11 = vector.shape_cast %10 : vector<18x16x12xf32> to vector<288x12xf32>
    %cst_5 = arith.constant 0.000000e+00 : f32
    %12 = vector.broadcast %cst_5 : f32 to vector<256x4xf32>
    %13 = vector.extract_strided_slice %11 {offsets = [0, 0], sizes = [256, 12], strides = [1, 1]} : vector<288x12xf32> to vector<256x12xf32>
    %c0_6 = arith.constant 0 : index
    %c0_7 = arith.constant 0 : index
    %c0_8 = arith.constant 0 : index
    %14 = vector.load %arg3[%c0_6, %c0_7, %c0_8] : memref<3x12x4xf32, #tpu.memory_space<vmem>>, vector<1x12x4xf32>
    %15 = vector.shape_cast %14 : vector<1x12x4xf32> to vector<12x4xf32>
    %cst_9 = arith.constant dense<0.000000e+00> : vector<256x4xf32>
    %16 = tpu.matmul %13, %15, %cst_9 {dimension_numbers = #tpu.dot_dimension_numbers<[1], [0], [0], [1], [0, 0, 1, 1], [], []>} : vector<256x12xf32>, vector<12x4xf32>, vector<256x4xf32> -> vector<256x4xf32>
    %17 = arith.addf %12, %16 : vector<256x4xf32>
    %18 = vector.extract_strided_slice %11 {offsets = [16, 0], sizes = [256, 12], strides = [1, 1]} : vector<288x12xf32> to vector<256x12xf32>
    %c1 = arith.constant 1 : index
    %c0_10 = arith.constant 0 : index
    %c0_11 = arith.constant 0 : index
    %19 = vector.load %arg3[%c1, %c0_10, %c0_11] : memref<3x12x4xf32, #tpu.memory_space<vmem>>, vector<1x12x4xf32>
    %20 = vector.shape_cast %19 : vector<1x12x4xf32> to vector<12x4xf32>
    %cst_12 = arith.constant dense<0.000000e+00> : vector<256x4xf32>
    %21 = tpu.matmul %18, %20, %cst_12 {dimension_numbers = #tpu.dot_dimension_numbers<[1], [0], [0], [1], [0, 0, 1, 1], [], []>} : vector<256x12xf32>, vector<12x4xf32>, vector<256x4xf32> -> vector<256x4xf32>
    %22 = arith.addf %17, %21 : vector<256x4xf32>
    %23 = vector.extract_strided_slice %11 {offsets = [32, 0], sizes = [256, 12], strides = [1, 1]} : vector<288x12xf32> to vector<256x12xf32>
    %c2 = arith.constant 2 : index
    %c0_13 = arith.constant 0 : index
    %c0_14 = arith.constant 0 : index
    %24 = vector.load %arg3[%c2, %c0_13, %c0_14] : memref<3x12x4xf32, #tpu.memory_space<vmem>>, vector<1x12x4xf32>
    %25 = vector.shape_cast %24 : vector<1x12x4xf32> to vector<12x4xf32>
    %cst_15 = arith.constant dense<0.000000e+00> : vector<256x4xf32>
    %26 = tpu.matmul %23, %25, %cst_15 {dimension_numbers = #tpu.dot_dimension_numbers<[1], [0], [0], [1], [0, 0, 1, 1], [], []>} : vector<256x12xf32>, vector<12x4xf32>, vector<256x4xf32> -> vector<256x4xf32>
    %27 = arith.addf %22, %26 : vector<256x4xf32>
    %c0_16 = arith.constant 0 : index
    %c0_17 = arith.constant 0 : index
    %28 = vector.load %arg4[%c0_16, %c0_17] : memref<1x4xf32, #tpu.memory_space<vmem>>, vector<1x4xf32>
    %29 = vector.broadcast %28 : vector<1x4xf32> to vector<256x4xf32>
    %30 = arith.addf %27, %29 : vector<256x4xf32>
    %31 = vector.shape_cast %1 : vector<16x16x4xf32> to vector<256x4xf32>
    %32 = arith.addf %30, %31 : vector<256x4xf32>
    %c0_18 = arith.constant 0 : index
    %c0_19 = arith.constant 0 : index
    %c0_20 = arith.constant 0 : index
    %33 = vector.load %arg5[%c0_18, %c0_19, %c0_20] : memref<1x256x4xf32, #tpu.memory_space<vmem>>, vector<1x256x4xf32>
    %34 = vector.shape_cast %33 : vector<1x256x4xf32> to vector<256x4xf32>
    %35 = vector.shape_cast %32 : vector<256x4xf32> to vector<1x256x4xf32>
    tpu.vector_store %arg5[%c0_18, %c0_19, %c0_20], %35 {strides = array<i32>} : memref<1x256x4xf32, #tpu.memory_space<vmem>>, vector<1x256x4xf32>,
    return
  }
  func.func @transform_0(%arg0: i32, %arg1: i32) -> (i32, i32, i32, i32) {
    %c0_i32 = arith.constant 0 : i32
    %c0_i32_0 = arith.constant 0 : i32
    %c0_i32_1 = arith.constant 0 : i32
    return %arg0, %arg1, %c0_i32, %c0_i32_0 : i32, i32, i32, i32
  }
  func.func @transform_1(%arg0: i32, %arg1: i32) -> (i32, i32, i32) {
    %c0_i32 = arith.constant 0 : i32
    %c0_i32_0 = arith.constant 0 : i32
    %c0_i32_1 = arith.constant 0 : i32
    %c0_i32_2 = arith.constant 0 : i32
    return %c0_i32, %c0_i32_0, %c0_i32_1 : i32, i32, i32
  }
  func.func @transform_2(%arg0: i32, %arg1: i32) -> (i32, i32) {
    %c0_i32 = arith.constant 0 : i32
    %c0_i32_0 = arith.constant 0 : i32
    %c0_i32_1 = arith.constant 0 : i32
    return %c0_i32, %c0_i32_0 : i32, i32
  }
  func.func @transform_3(%arg0: i32, %arg1: i32) -> (i32, i32, i32) {
    %c0_i32 = arith.constant 0 : i32
    %c0_i32_0 = arith.constant 0 : i32
    return %arg0, %arg1, %c0_i32 : i32, i32, i32
  }
}

</mosaic_0001>

<llo_original>
// kernel: residual_conv.1
$region0: #{residual_conv.1}
  #allocation0 [shape = 'u32[]', space=smem, size = 0x4, offset = 0x4, fixed_abs, tag = 'smem constant byte address 0x4 - core index']
  #allocation1 [shape = 'u32[144,128]{1,0:T(1,128)}', space=vmem, size = 0x12000, scoped, tag = 'internal scratch']
  %s0 = inlined_call_operand.vmem [shape: f32[2,16,16,4], index: 0, kind: input, shape index: {}]
  %s1 = inlined_call_operand.vmem [shape: f32[3,12,4], index: 1, kind: input, shape index: {}]
  %s2 = inlined_call_operand.vmem [shape: f32[1,4], index: 2, kind: input, shape index: {}]
  %s3 = inlined_call_operand.vmem [shape: f32[2,256,4], index: 3, kind: output, shape index: {}]
  %s4 = sld [smem:[#allocation0]]
  $region45: #{residual_conv.1} parent=0
    _
  %s6 = ssub.s32 1, %s4
  %s7 = scalar_select 0, %s6, %s4
  loop: start=0, step=1, limit=4
  $region2: #{residual_conv.1} parent=0 // loop_pre_header
    _
  $region3: #{residual_conv.1} parent=0 // loop_header
    %s9 = sphi 0, %s13
    %p10 = scmp.ge.s32.totalorder %s9, 4
    %s16 = sphi 0, %s28
    %s17 = sphi 0, %s24
    %s18 = sphi 0, %s16
    %s19 = sphi 0, %s17
    %s20 = sphi 0, %s18
    %s21 = sphi 0, %s19
    %s33 = sphi 0, %s35
    %s36 = sphi 0, %s33
    %s37 = sphi 0, %s36
    %s53 = sphi 0, %s37
    %s57 = sphi 0, %s57
    %s59 = sphi 0, %s57
    %s60 = sphi 0, %s59
    %s74 = sphi 0, %s60
    %s78 = sphi 0, %s78
    %s80 = sphi 0, %s78
    %s81 = sphi 0, %s80
    %s95 = sphi 0, %s81
    %s103 = sphi 0, %s105
    %s106 = sphi 0, %s103
    %s107 = sphi 0, %s106
    %s123 = sphi 0, %s107
  $region4: #{residual_conv.1} parent=0 // loop_header_branch
    %12 = sbr.rel (%p10) target = $region8
  $region5: #{residual_conv.1} parent=0 // loop_body
    %s14 = ssub.s32 %s9, 1
    %s15 = ssub.s32 %s9, 2
    %s22 = sadd.s32 1, %s17
    %p23 = scmp.ge.s32.totalorder %s22, 1
    %s24 = scalar_select %p23, 0, %s22
    %s25 = sadd.s32 1, %s16
    %s26 = scalar_select %p23, %s25, %s16
    %p27 = scmp.ge.s32.totalorder %s26, 2
    %s28 = scalar_select %p27, 0, %s26
    %s29 = ssub.s32 %s16, %s28
    %s30 = ssub.s32 %s17, %s24
    %s31 = sor.u32 %s29, %s30
    %p32 = scmp.eq.s32.totalorder %s31, 0
    %s34 = sadd.s32 %s33, 1
    %s35 = scalar_select %p32, %s33, %s34
    %p38 = pneg %p32
    %p39 = scmp.eq.s32.totalorder %s9, 1
    %p40 = por %p38, %p39
    %p41 = scmp.ne.s32.totalorder %s33, %s36
    %p42 = scmp.eq.s32.totalorder %s9, 0
    %p43 = por %p41, %p42
    %p44 = scmp.ne.s32.totalorder %s33, %s36
    %p45 = scmp.eq.s32.totalorder %s14, 1
    %p46 = por %p44, %p45
    %p47 = scmp.ne.s32.totalorder %s36, %s37
    %p48 = scmp.eq.s32.totalorder %s14, 0
    %p49 = por %p47, %p48
    %p50 = scmp.ne.s32.totalorder %s36, %s37
    %p51 = scmp.eq.s32.totalorder %s15, 1
    %p52 = por %p50, %p51
    %p54 = scmp.ne.s32.totalorder %s37, %s53
    %p55 = scmp.eq.s32.totalorder %s15, 0
    %p56 = por %p54, %p55
    %s58 = sadd.s32 %s57, 1
    %p61 = scmp.eq.s32.totalorder %s9, 1
    %p62 = scmp.ne.s32.totalorder %s57, %s59
    %p63 = scmp.eq.s32.totalorder %s9, 0
    %p64 = por %p62, %p63
    %p65 = scmp.ne.s32.totalorder %s57, %s59
    %p66 = scmp.eq.s32.totalorder %s14, 1
    %p67 = por %p65, %p66
    %p68 = scmp.ne.s32.totalorder %s59, %s60
    %p69 = scmp.eq.s32.totalorder %s14, 0
    %p70 = por %p68, %p69
    %p71 = scmp.ne.s32.totalorder %s59, %s60
    %p72 = scmp.eq.s32.totalorder %s15, 1
    %p73 = por %p71, %p72
    %p75 = scmp.ne.s32.totalorder %s60, %s74
    %p76 = scmp.eq.s32.totalorder %s15, 0
    %p77 = por %p75, %p76
    %s79 = sadd.s32 %s78, 1
    %p82 = scmp.eq.s32.totalorder %s9, 1
    %p83 = scmp.ne.s32.totalorder %s78, %s80
    %p84 = scmp.eq.s32.totalorder %s9, 0
    %p85 = por %p83, %p84
    %p86 = scmp.ne.s32.totalorder %s78, %s80
    %p87 = scmp.eq.s32.totalorder %s14, 1
    %p88 = por %p86, %p87
    %p89 = scmp.ne.s32.totalorder %s80, %s81
    %p90 = scmp.eq.s32.totalorder %s14, 0
    %p91 = por %p89, %p90
    %p92 = scmp.ne.s32.totalorder %s80, %s81
    %p93 = scmp.eq.s32.totalorder %s15, 1
    %p94 = por %p92, %p93
    %p96 = scmp.ne.s32.totalorder %s81, %s95
    %p97 = scmp.eq.s32.totalorder %s15, 0
    %p98 = por %p96, %p97
    %s99 = ssub.s32 %s16, %s28
    %s100 = ssub.s32 %s17, %s24
    %s101 = sor.u32 %s99, %s100
    %p102 = scmp.eq.s32.totalorder %s101, 0
    %s104 = sadd.s32 %s103, 1
    %s105 = scalar_select %p102, %s103, %s104
    %p108 = pneg %p102
    %p109 = scmp.eq.s32.totalorder %s9, 1
    %p110 = por %p108, %p109
    %p111 = scmp.ne.s32.totalorder %s103, %s106
    %p112 = scmp.eq.s32.totalorder %s9, 0
    %p113 = por %p111, %p112
    %p114 = scmp.ne.s32.totalorder %s103, %s106
    %p115 = scmp.eq.s32.totalorder %s14, 1
    %p116 = por %p114, %p115
    %p117 = scmp.ne.s32.totalorder %s106, %s107
    %p118 = scmp.eq.s32.totalorder %s14, 0
    %p119 = por %p117, %p118
    %p120 = scmp.ne.s32.totalorder %s106, %s107
    %p121 = scmp.eq.s32.totalorder %s15, 1
    %p122 = por %p120, %p121
    %p124 = scmp.ne.s32.totalorder %s107, %s123
    %p125 = scmp.eq.s32.totalorder %s15, 0
    %p126 = por %p124, %p125
    %p127 = scmp.le.s32.totalorder 1, %s9
    %p128 = scmp.lt.s32.totalorder %s9, 3
    %p129 = pnand %p127, %p128
    %p130 = pneg %p129
    // Predicated region
    $region9: #{residual_conv.1} parent=5 // pred_check
      _
    $region10: #{residual_conv.1} parent=5 // pred_check_branch
      %132 = sbr.rel (%p129) target = $region12
    $region11: #{residual_conv.1} parent=5 // pred_region
      %s133 = ssub.s32 %s9, 1
      // Predicated region
      $region13: #{residual_conv.1} parent=11 // pred_check
        %p134 = pneg %p70
      $region14: #{residual_conv.1} parent=11 // pred_check_branch
        %136 = sbr.rel (%p134) target = $region16
      $region15: #{residual_conv.1} parent=11 // pred_region
        _
      $region16: #{residual_conv.1} parent=11 // pred_fallthru
        _
      // Predicated region
      $region17: #{residual_conv.1} parent=11 // pred_check
        %p137 = pneg %p91
      $region18: #{residual_conv.1} parent=11 // pred_check_branch
        %139 = sbr.rel (%p137) target = $region20
      $region19: #{residual_conv.1} parent=11 // pred_region
        _
      $region20: #{residual_conv.1} parent=11 // pred_fallthru
        _
    $region12: #{residual_conv.1} parent=5 // pred_fallthru
      _
    %p140 = scmp.lt.s32.totalorder %s9, 2
    // Predicated region
    $region21: #{residual_conv.1} parent=5 // pred_check
      %p141 = pneg %p140
    $region22: #{residual_conv.1} parent=5 // pred_check_branch
      %143 = sbr.rel (%p141) target = $region24
    $region23: #{residual_conv.1} parent=5 // pred_region
      // Predicated region
      $region25: #{residual_conv.1} parent=23 // pred_check
        %p144 = pneg %p43
      $region26: #{residual_conv.1} parent=23 // pred_check_branch
        %146 = sbr.rel (%p144) target = $region28
      $region27: #{residual_conv.1} parent=23 // pred_region
        %s147 = smul.u32 16, %s17
        %p148 = scmp.lt.s32.totalorder %s16, 1
        %s149 = scalar_select %p148, %s16, 1
        %p150 = scmp.lt.s32.totalorder %s147, 15
        %s151 = scalar_select %p150, %s147, 15
        %s152 = smul.addr %s151, 2
        %s153 = smul.addr %s149, 32
        %s154 = sadd.s32 %s152, %s153
        %s155 = smul.addr %s154, 8
        %s156 = scalar_lea.vmem %s0, %s155
        %s157 = smul.u32 16, %s17
      $region28: #{residual_conv.1} parent=23 // pred_fallthru
        _
    $region24: #{residual_conv.1} parent=5 // pred_fallthru
      _
    %p158 = scmp.le.s32.totalorder 1, %s9
    %p159 = scmp.lt.s32.totalorder %s9, 3
    %p160 = pnand %p158, %p159
    %p161 = pneg %p160
    // Predicated region
    $region29: #{residual_conv.1} parent=5 // pred_check
      _
    $region30: #{residual_conv.1} parent=5 // pred_check_branch
      %163 = sbr.rel (%p160) target = $region32
    $region31: #{residual_conv.1} parent=5 // pred_region
      %s164 = ssub.s32 %s9, 1
      %s165 = smul.u32 16, %s19
      %p166 = scmp.lt.s32.totalorder %s18, 1
      %s167 = scalar_select %p166, %s18, 1
      %p168 = scmp.lt.s32.totalorder %s165, 15
      %s169 = scalar_select %p168, %s165, 15
      %s170 = smul.addr %s169, 2
      %s171 = smul.addr %s167, 32
      %s172 = sadd.s32 %s170, %s171
      %s173 = smul.addr %s172, 8
      %s174 = scalar_lea.vmem %s0, %s173
      %p175 = pneg %p49
      %p176 = pneg %p46
      %p177 = pneg %p70
      %p178 = pneg %p67
      %p179 = pneg %p91
      %p180 = pneg %p88
      %p181 = pneg %p119
      %p182 = pneg %p116
      %s183 = smul.u32 32, %s19
      %p184 = scmp.lt.s32.totalorder %s18, 1
      %s185 = scalar_select %p184, %s18, 1
      %p186 = scmp.lt.s32.totalorder %s183, 31
      %s187 = scalar_select %p186, %s183, 31
      %s188 = smul.addr %s185, 32
      %s189 = sadd.s32 %s187, %s188
      %s190 = smul.addr %s189, 8
      %s191 = scalar_lea.vmem %s3, %s190
      %s192 = smul.u32 16, %s19
      %p193 = scmp.lt.s32.totalorder %s18, 1
      %s194 = scalar_select %p193, %s18, 1
      %p195 = scmp.lt.s32.totalorder %s192, 15
      %s196 = scalar_select %p195, %s192, 15
      %s197 = smul.addr %s196, 2
      %s198 = smul.addr %s194, 32
      %s199 = sadd.s32 %s197, %s198
      %s200 = smul.addr %s199, 8
      %s201 = scalar_lea.vmem %s0, %s200
      %s202 = smul.u32 16, %s19
      %s203 = smul.u32 32, %s19
      %p204 = scmp.lt.s32.totalorder %s18, 1
      %s205 = scalar_select %p204, %s18, 1
      %p206 = scmp.lt.s32.totalorder %s203, 31
      %s207 = scalar_select %p206, %s203, 31
      %s208 = smul.addr %s205, 32
      %s209 = sadd.s32 %s207, %s208
      %s210 = smul.addr %s209, 8
      %s211 = scalar_lea.vmem %s3, %s210
      %s212 = smul.u32 32, %s19
      %v213 = vld [vmem:[%s201] sm:$0xff]
      %v214 = vld [vmem:[%s201 + $0x8] sm:$0xff]
      %v215 = vld [vmem:[%s201 + $0x10] sm:$0xff]
      %v216 = vld [vmem:[%s201 + $0x18] sm:$0xff]
      %v217 = vld [vmem:[%s201 + $0x20] sm:$0xff]
      %v218 = vld [vmem:[%s201 + $0x28] sm:$0xff]
      %v219 = vld [vmem:[%s201 + $0x30] sm:$0xff]
      %v220 = vld [vmem:[%s201 + $0x38] sm:$0xff]
      %v221 = vld [vmem:[%s201 + $0x40] sm:$0xff]
      %v222 = vld [vmem:[%s201 + $0x48] sm:$0xff]
      %v223 = vld [vmem:[%s201 + $0x50] sm:$0xff]
      %v224 = vld [vmem:[%s201 + $0x58] sm:$0xff]
      %v225 = vld [vmem:[%s201 + $0x60] sm:$0xff]
      %v226 = vld [vmem:[%s201 + $0x68] sm:$0xff]
      %v227 = vld [vmem:[%s201 + $0x70] sm:$0xff]
      %v228 = vld [vmem:[%s201 + $0x78] sm:$0xff]
      %v229 = vld [vmem:[%s201 + $0x80] sm:$0xff]
      %v230 = vld [vmem:[%s201 + $0x88] sm:$0xff]
      %v231 = vld [vmem:[%s201 + $0x90] sm:$0xff]
      %v232 = vld [vmem:[%s201 + $0x98] sm:$0xff]
      %v233 = vld [vmem:[%s201 + $0xa0] sm:$0xff]
      %v234 = vld [vmem:[%s201 + $0xa8] sm:$0xff]
      %v235 = vld [vmem:[%s201 + $0xb0] sm:$0xff]
      %v236 = vld [vmem:[%s201 + $0xb8] sm:$0xff]
      %v237 = vld [vmem:[%s201 + $0xc0] sm:$0xff]
      %v238 = vld [vmem:[%s201 + $0xc8] sm:$0xff]
      %v239 = vld [vmem:[%s201 + $0xd0] sm:$0xff]
      %v240 = vld [vmem:[%s201 + $0xd8] sm:$0xff]
      %v241 = vld [vmem:[%s201 + $0xe0] sm:$0xff]
      %v242 = vld [vmem:[%s201 + $0xe8] sm:$0xff]
      %v243 = vld [vmem:[%s201 + $0xf0] sm:$0xff]
      %v244 = vld [vmem:[%s201 + $0xf8] sm:$0xff]
      %vm278 = vcmask 1040384
      %v279 = vrot.slane 0.0, 7
      %v280 = vsel %vm278, %v279, %v279
      %v281 = vrot.slane %v213, 7
      %v282 = vrot.slane %v214, 7
      %v283 = vsel %vm278, %v281, %v282
      %v284 = vrot.slane %v215, 7
      %v285 = vrot.slane %v216, 7
      %v286 = vsel %vm278, %v284, %v285
      %v287 = vrot.slane %v217, 7
      %v288 = vrot.slane %v218, 7
      %v289 = vsel %vm278, %v287, %v288
      %v290 = vrot.slane %v219, 7
      %v291 = vrot.slane %v220, 7
      %v292 = vsel %vm278, %v290, %v291
      %v293 = vrot.slane %v221, 7
      %v294 = vrot.slane %v222, 7
      %v295 = vsel %vm278, %v293, %v294
      %v296 = vrot.slane %v223, 7
      %v297 = vrot.slane %v224, 7
      %v298 = vsel %vm278, %v296, %v297
      %v299 = vrot.slane %v225, 7
      %v300 = vrot.slane %v226, 7
      %v301 = vsel %vm278, %v299, %v300
      %v302 = vrot.slane %v227, 7
      %v303 = vrot.slane %v228, 7
      %v304 = vsel %vm278, %v302, %v303
      %v305 = vrot.slane %v229, 7
      %v306 = vrot.slane %v230, 7
      %v307 = vsel %vm278, %v305, %v306
      %v308 = vrot.slane %v231, 7
      %v309 = vrot.slane %v232, 7
      %v310 = vsel %vm278, %v308, %v309
      %v311 = vrot.slane %v233, 7
      %v312 = vrot.slane %v234, 7
      %v313 = vsel %vm278, %v311, %v312
      %v314 = vrot.slane %v235, 7
      %v315 = vrot.slane %v236, 7
      %v316 = vsel %vm278, %v314, %v315
      %v317 = vrot.slane %v237, 7
      %v318 = vrot.slane %v238, 7
      %v319 = vsel %vm278, %v317, %v318
      %v320 = vrot.slane %v239, 7
      %v321 = vrot.slane %v240, 7
      %v322 = vsel %vm278, %v320, %v321
      %v323 = vrot.slane %v241, 7
      %v324 = vrot.slane %v242, 7
      %v325 = vsel %vm278, %v323, %v324
      %v326 = vrot.slane %v243, 7
      %v327 = vrot.slane %v244, 7
      %v328 = vsel %vm278, %v326, %v327
      %v363 = vsel %vm278, 0.0, %v279
      %v364 = vsel %vm278, 0.0, %v281
      %v365 = vsel %vm278, 0.0, %v284
      %v366 = vsel %vm278, 0.0, %v287
      %v367 = vsel %vm278, 0.0, %v290
      %v368 = vsel %vm278, 0.0, %v293
      %v369 = vsel %vm278, 0.0, %v296
      %v370 = vsel %vm278, 0.0, %v299
      %v371 = vsel %vm278, 0.0, %v302
      %v372 = vsel %vm278, 0.0, %v305
      %v373 = vsel %vm278, 0.0, %v308
      %v374 = vsel %vm278, 0.0, %v311
      %v375 = vsel %vm278, 0.0, %v314
      %v376 = vsel %vm278, 0.0, %v317
      %v377 = vsel %vm278, 0.0, %v320
      %v378 = vsel %vm278, 0.0, %v323
      %v379 = vsel %vm278, 0.0, %v326
      %vm380 = vcmask 1046528
      %v381 = vrot.slane 0.0, 1
      %v382 = vsel %vm380, %v381, %v381
      %v383 = vrot.slane %v213, 1
      %v384 = vrot.slane %v214, 1
      %v385 = vsel %vm380, %v383, %v384
      %v386 = vrot.slane %v215, 1
      %v387 = vrot.slane %v216, 1
      %v388 = vsel %vm380, %v386, %v387
      %v389 = vrot.slane %v217, 1
      %v390 = vrot.slane %v218, 1
      %v391 = vsel %vm380, %v389, %v390
      %v392 = vrot.slane %v219, 1
      %v393 = vrot.slane %v220, 1
      %v394 = vsel %vm380, %v392, %v393
      %v395 = vrot.slane %v221, 1
      %v396 = vrot.slane %v222, 1
      %v397 = vsel %vm380, %v395, %v396
      %v398 = vrot.slane %v223, 1
      %v399 = vrot.slane %v224, 1
      %v400 = vsel %vm380, %v398, %v399
      %v401 = vrot.slane %v225, 1
      %v402 = vrot.slane %v226, 1
      %v403 = vsel %vm380, %v401, %v402
      %v404 = vrot.slane %v227, 1
      %v405 = vrot.slane %v228, 1
      %v406 = vsel %vm380, %v404, %v405
      %v407 = vrot.slane %v229, 1
      %v408 = vrot.slane %v230, 1
      %v409 = vsel %vm380, %v407, %v408
      %v410 = vrot.slane %v231, 1
      %v411 = vrot.slane %v232, 1
      %v412 = vsel %vm380, %v410, %v411
      %v413 = vrot.slane %v233, 1
      %v414 = vrot.slane %v234, 1
      %v415 = vsel %vm380, %v413, %v414
      %v416 = vrot.slane %v235, 1
      %v417 = vrot.slane %v236, 1
      %v418 = vsel %vm380, %v416, %v417
      %v419 = vrot.slane %v237, 1
      %v420 = vrot.slane %v238, 1
      %v421 = vsel %vm380, %v419, %v420
      %v422 = vrot.slane %v239, 1
      %v423 = vrot.slane %v240, 1
      %v424 = vsel %vm380, %v422, %v423
      %v425 = vrot.slane %v241, 1
      %v426 = vrot.slane %v242, 1
      %v427 = vsel %vm380, %v425, %v426
      %v428 = vrot.slane %v243, 1
      %v429 = vrot.slane %v244, 1
      %v430 = vsel %vm380, %v428, %v429
      %v448 = vsel %vm380, %v381, 0.0
      %v449 = vsel %vm380, %v384, 0.0
      %v450 = vsel %vm380, %v387, 0.0
      %v451 = vsel %vm380, %v390, 0.0
      %v452 = vsel %vm380, %v393, 0.0
      %v453 = vsel %vm380, %v396, 0.0
      %v454 = vsel %vm380, %v399, 0.0
      %v455 = vsel %vm380, %v402, 0.0
      %v456 = vsel %vm380, %v405, 0.0
      %v457 = vsel %vm380, %v408, 0.0
      %v458 = vsel %vm380, %v411, 0.0
      %v459 = vsel %vm380, %v414, 0.0
      %v460 = vsel %vm380, %v417, 0.0
      %v461 = vsel %vm380, %v420, 0.0
      %v462 = vsel %vm380, %v423, 0.0
      %v463 = vsel %vm380, %v426, 0.0
      %v464 = vsel %vm380, %v429, 0.0
      %465 = vrot.lane.b32.xlu0 0.0, 4
      %v466 = vpop.permute.xlu0 %465
      %467 = vrot.lane.b32.xlu0 %v213, 4
      %v468 = vpop.permute.xlu0 %467
      %469 = vrot.lane.b32.xlu0 %v214, 4
      %v470 = vpop.permute.xlu0 %469
      %471 = vrot.lane.b32.xlu0 %v215, 4
      %v472 = vpop.permute.xlu0 %471
      %473 = vrot.lane.b32.xlu0 %v216, 4
      %v474 = vpop.permute.xlu0 %473
      %475 = vrot.lane.b32.xlu0 %v217, 4
      %v476 = vpop.permute.xlu0 %475
      %477 = vrot.lane.b32.xlu0 %v218, 4
      %v478 = vpop.permute.xlu0 %477
      %479 = vrot.lane.b32.xlu0 %v219, 4
      %v480 = vpop.permute.xlu0 %479
      %481 = vrot.lane.b32.xlu0 %v220, 4
      %v482 = vpop.permute.xlu0 %481
      %483 = vrot.lane.b32.xlu0 %v221, 4
      %v484 = vpop.permute.xlu0 %483
      %485 = vrot.lane.b32.xlu0 %v222, 4
      %v486 = vpop.permute.xlu0 %485
      %487 = vrot.lane.b32.xlu0 %v223, 4
      %v488 = vpop.permute.xlu0 %487
      %489 = vrot.lane.b32.xlu0 %v224, 4
      %v490 = vpop.permute.xlu0 %489
      %491 = vrot.lane.b32.xlu0 %v225, 4
      %v492 = vpop.permute.xlu0 %491
      %493 = vrot.lane.b32.xlu0 %v226, 4
      %v494 = vpop.permute.xlu0 %493
      %495 = vrot.lane.b32.xlu0 %v227, 4
      %v496 = vpop.permute.xlu0 %495
      %497 = vrot.lane.b32.xlu0 %v228, 4
      %v498 = vpop.permute.xlu0 %497
      %499 = vrot.lane.b32.xlu0 %v229, 4
      %v500 = vpop.permute.xlu0 %499
      %501 = vrot.lane.b32.xlu0 %v230, 4
      %v502 = vpop.permute.xlu0 %501
      %503 = vrot.lane.b32.xlu0 %v231, 4
      %v504 = vpop.permute.xlu0 %503
      %505 = vrot.lane.b32.xlu0 %v232, 4
      %v506 = vpop.permute.xlu0 %505
      %507 = vrot.lane.b32.xlu0 %v233, 4
      %v508 = vpop.permute.xlu0 %507
      %509 = vrot.lane.b32.xlu0 %v234, 4
      %v510 = vpop.permute.xlu0 %509
      %511 = vrot.lane.b32.xlu0 %v235, 4
      %v512 = vpop.permute.xlu0 %511
      %513 = vrot.lane.b32.xlu0 %v236, 4
      %v514 = vpop.permute.xlu0 %513
      %515 = vrot.lane.b32.xlu0 %v237, 4
      %v516 = vpop.permute.xlu0 %515
      %517 = vrot.lane.b32.xlu0 %v238, 4
      %v518 = vpop.permute.xlu0 %517
      %519 = vrot.lane.b32.xlu0 %v239, 4
      %v520 = vpop.permute.xlu0 %519
      %521 = vrot.lane.b32.xlu0 %v240, 4
      %v522 = vpop.permute.xlu0 %521
      %523 = vrot.lane.b32.xlu0 %v241, 4
      %v524 = vpop.permute.xlu0 %523
      %525 = vrot.lane.b32.xlu0 %v242, 4
      %v526 = vpop.permute.xlu0 %525
      %527 = vrot.lane.b32.xlu0 %v243, 4
      %v528 = vpop.permute.xlu0 %527
      %529 = vrot.lane.b32.xlu0 %v244, 4
      %v530 = vpop.permute.xlu0 %529
      %581 = vrot.lane.b32.xlu0 %v382, 8
      %v582 = vpop.permute.xlu0 %581
      %583 = vrot.lane.b32.xlu0 %v448, 8
      %v584 = vpop.permute.xlu0 %583
      %585 = vrot.lane.b32.xlu0 %v385, 8
      %v586 = vpop.permute.xlu0 %585
      %587 = vrot.lane.b32.xlu0 %v449, 8
      %v588 = vpop.permute.xlu0 %587
      %589 = vrot.lane.b32.xlu0 %v388, 8
      %v590 = vpop.permute.xlu0 %589
      %591 = vrot.lane.b32.xlu0 %v450, 8
      %v592 = vpop.permute.xlu0 %591
      %593 = vrot.lane.b32.xlu0 %v391, 8
      %v594 = vpop.permute.xlu0 %593
      %595 = vrot.lane.b32.xlu0 %v451, 8
      %v596 = vpop.permute.xlu0 %595
      %597 = vrot.lane.b32.xlu0 %v394, 8
      %v598 = vpop.permute.xlu0 %597
      %599 = vrot.lane.b32.xlu0 %v452, 8
      %v600 = vpop.permute.xlu0 %599
      %601 = vrot.lane.b32.xlu0 %v397, 8
      %v602 = vpop.permute.xlu0 %601
      %603 = vrot.lane.b32.xlu0 %v453, 8
      %v604 = vpop.permute.xlu0 %603
      %605 = vrot.lane.b32.xlu0 %v400, 8
      %v606 = vpop.permute.xlu0 %605
      %607 = vrot.lane.b32.xlu0 %v454, 8
      %v608 = vpop.permute.xlu0 %607
      %609 = vrot.lane.b32.xlu0 %v403, 8
      %v610 = vpop.permute.xlu0 %609
      %611 = vrot.lane.b32.xlu0 %v455, 8
      %v612 = vpop.permute.xlu0 %611
      %613 = vrot.lane.b32.xlu0 %v406, 8
      %v614 = vpop.permute.xlu0 %613
      %615 = vrot.lane.b32.xlu0 %v456, 8
      %v616 = vpop.permute.xlu0 %615
      %617 = vrot.lane.b32.xlu0 %v409, 8
      %v618 = vpop.permute.xlu0 %617
      %619 = vrot.lane.b32.xlu0 %v457, 8
      %v620 = vpop.permute.xlu0 %619
      %621 = vrot.lane.b32.xlu0 %v412, 8
      %v622 = vpop.permute.xlu0 %621
      %623 = vrot.lane.b32.xlu0 %v458, 8
      %v624 = vpop.permute.xlu0 %623
      %625 = vrot.lane.b32.xlu0 %v415, 8
      %v626 = vpop.permute.xlu0 %625
      %627 = vrot.lane.b32.xlu0 %v459, 8
      %v628 = vpop.permute.xlu0 %627
      %629 = vrot.lane.b32.xlu0 %v418, 8
      %v630 = vpop.permute.xlu0 %629
      %631 = vrot.lane.b32.xlu0 %v460, 8
      %v632 = vpop.permute.xlu0 %631
      %633 = vrot.lane.b32.xlu0 %v421, 8
      %v634 = vpop.permute.xlu0 %633
      %635 = vrot.lane.b32.xlu0 %v461, 8
      %v636 = vpop.permute.xlu0 %635
      %637 = vrot.lane.b32.xlu0 %v424, 8
      %v638 = vpop.permute.xlu0 %637
      %639 = vrot.lane.b32.xlu0 %v462, 8
      %v640 = vpop.permute.xlu0 %639
      %641 = vrot.lane.b32.xlu0 %v427, 8
      %v642 = vpop.permute.xlu0 %641
      %643 = vrot.lane.b32.xlu0 %v463, 8
      %v644 = vpop.permute.xlu0 %643
      %645 = vrot.lane.b32.xlu0 %v430, 8
      %v646 = vpop.permute.xlu0 %645
      %647 = vrot.lane.b32.xlu0 %v464, 8
      %v648 = vpop.permute.xlu0 %647
      %vm683 = vcmask 31744
      %v684 = vsel %vm683, %v363, %v466
      %v685 = vsel %vm683, %v280, %v466
      %v686 = vsel %vm683, %v364, %v468
      %v687 = vsel %vm683, %v283, %v470
      %v688 = vsel %vm683, %v365, %v472
      %v689 = vsel %vm683, %v286, %v474
      %v690 = vsel %vm683, %v366, %v476
      %v691 = vsel %vm683, %v289, %v478
      %v692 = vsel %vm683, %v367, %v480
      %v693 = vsel %vm683, %v292, %v482
      %v694 = vsel %vm683, %v368, %v484
      %v695 = vsel %vm683, %v295, %v486
      %v696 = vsel %vm683, %v369, %v488
      %v697 = vsel %vm683, %v298, %v490
      %v698 = vsel %vm683, %v370, %v492
      %v699 = vsel %vm683, %v301, %v494
      %v700 = vsel %vm683, %v371, %v496
      %v701 = vsel %vm683, %v304, %v498
      %v702 = vsel %vm683, %v372, %v500
      %v703 = vsel %vm683, %v307, %v502
      %v704 = vsel %vm683, %v373, %v504
      %v705 = vsel %vm683, %v310, %v506
      %v706 = vsel %vm683, %v374, %v508
      %v707 = vsel %vm683, %v313, %v510
      %v708 = vsel %vm683, %v375, %v512
      %v709 = vsel %vm683, %v316, %v514
      %v710 = vsel %vm683, %v376, %v516
      %v711 = vsel %vm683, %v319, %v518
      %v712 = vsel %vm683, %v377, %v520
      %v713 = vsel %vm683, %v322, %v522
      %v714 = vsel %vm683, %v378, %v524
      %v715 = vsel %vm683, %v325, %v526
      %v716 = vsel %vm683, %v379, %v528
      %v717 = vsel %vm683, %v328, %v530
      %vm718 = vcmask 64512
      %v719 = vsel %vm718, %v684, %v582
      %v720 = vsel %vm718, %v685, %v584
      %v721 = vsel %vm718, %v686, %v586
      %v722 = vsel %vm718, %v687, %v588
      %v723 = vsel %vm718, %v688, %v590
      %v724 = vsel %vm718, %v689, %v592
      %v725 = vsel %vm718, %v690, %v594
      %v726 = vsel %vm718, %v691, %v596
      %v727 = vsel %vm718, %v692, %v598
      %v728 = vsel %vm718, %v693, %v600
      %v729 = vsel %vm718, %v694, %v602
      %v730 = vsel %vm718, %v695, %v604
      %v731 = vsel %vm718, %v696, %v606
      %v732 = vsel %vm718, %v697, %v608
      %v733 = vsel %vm718, %v698, %v610
      %v734 = vsel %vm718, %v699, %v612
      %v735 = vsel %vm718, %v700, %v614
      %v736 = vsel %vm718, %v701, %v616
      %v737 = vsel %vm718, %v702, %v618
      %v738 = vsel %vm718, %v703, %v620
      %v739 = vsel %vm718, %v704, %v622
      %v740 = vsel %vm718, %v705, %v624
      %v741 = vsel %vm718, %v706, %v626
      %v742 = vsel %vm718, %v707, %v628
      %v743 = vsel %vm718, %v708, %v630
      %v744 = vsel %vm718, %v709, %v632
      %v745 = vsel %vm718, %v710, %v634
      %v746 = vsel %vm718, %v711, %v636
      %v747 = vsel %vm718, %v712, %v638
      %v748 = vsel %vm718, %v713, %v640
      %v749 = vsel %vm718, %v714, %v642
      %v750 = vsel %vm718, %v715, %v644
      %v751 = vsel %vm718, %v716, %v646
      %v752 = vsel %vm718, %v717, %v648
      %v753 = vld [vmem:[%s1] sm:$0xff]
      %v754 = vld [vmem:[%s1 + $0x8] sm:$0xf]
      %s755 = scalar_lea.vmem %s1, 16
      %v756 = vld [vmem:[%s755] sm:$0xff]
      %v757 = vld [vmem:[%s755 + $0x8] sm:$0xf]
      %vm758 = vcmask 97280
      %v760 = vsel %vm758, %v721, 0
      %v763 = vsel %vm758, %v722, 0
      %v766 = vsel %vm758, %v723, 0
      %v769 = vsel %vm758, %v724, 0
      %v772 = vsel %vm758, %v725, 0
      %v775 = vsel %vm758, %v726, 0
      %v778 = vsel %vm758, %v727, 0
      %v781 = vsel %vm758, %v728, 0
      %v784 = vsel %vm758, %v729, 0
      %v787 = vsel %vm758, %v730, 0
      %v790 = vsel %vm758, %v731, 0
      %v793 = vsel %vm758, %v732, 0
      %v796 = vsel %vm758, %v733, 0
      %v799 = vsel %vm758, %v734, 0
      %v802 = vsel %vm758, %v735, 0
      %v805 = vsel %vm758, %v736, 0
      %v808 = vsel %vm758, %v737, 0
      %v811 = vsel %vm758, %v738, 0
      %v814 = vsel %vm758, %v739, 0
      %v817 = vsel %vm758, %v740, 0
      %v820 = vsel %vm758, %v741, 0
      %v823 = vsel %vm758, %v742, 0
      %v826 = vsel %vm758, %v743, 0
      %v829 = vsel %vm758, %v744, 0
      %v832 = vsel %vm758, %v745, 0
      %v835 = vsel %vm758, %v746, 0
      %v838 = vsel %vm758, %v747, 0
      %v841 = vsel %vm758, %v748, 0
      %v844 = vsel %vm758, %v749, 0
      %v847 = vsel %vm758, %v750, 0
      %v850 = vsel %vm758, %v751, 0
      %v853 = vsel %vm758, %v752, 0
      %vm855 = vcmask 1043456
      %v857 = vsel %vm855, %v757, 0
      %859 = vmatprep.subr.mxu0 0.0
      %860 = vmatpush1.msra.mxu0 %v756
      %861 = vmatprep.subr.mxu0 0.0
      %862 = vmatpush1.msra.mxu0 %v857
      %863 = vmatprep.subr.mxu0 0.0
      %864 = vmatpush1.msra.mxu0 0.0
      %865 = vmatprep.subr.mxu0 0.0
      %866 = vmatpush1.msra.mxu0 0.0
      %867 = vmatprep.subr.mxu0 0.0
      %868 = vmatpush1.msra.mxu0 0.0
      %869 = vmatprep.subr.mxu0 0.0
      %870 = vmatpush1.msra.mxu0 0.0
      %871 = vmatprep.subr.mxu0 0.0
      %872 = vmatpush1.msra.mxu0 0.0
      %873 = vmatprep.subr.mxu0 0.0
      %874 = vmatpush1.msra.mxu0 0.0
      %875 = vmatprep.subr.mxu0 0.0
      %876 = vmatpush1.msra.mxu0 0.0
      %877 = vmatprep.subr.mxu0 0.0
      %878 = vmatpush1.msra.mxu0 0.0
      %879 = vmatprep.subr.mxu0 0.0
      %880 = vmatpush1.msra.mxu0 0.0
      %881 = vmatprep.subr.mxu0 0.0
      %882 = vmatpush1.msra.mxu0 0.0
      %883 = vmatprep.subr.mxu0 0.0
      %884 = vmatpush1.msra.mxu0 0.0
      %885 = vmatprep.subr.mxu0 0.0
      %886 = vmatpush1.msra.mxu0 0.0
      %887 = vmatprep.subr.mxu0 0.0
      %888 = vmatpush1.msra.mxu0 0.0
      %889 = vmatprep.subr.mxu0 0.0
      %890 = vmatpush1.msra.mxu0 0.0
      %891 = vmatprep.subr.mxu0 0.0
      %892 = vmatpush1.msra.mxu0 0.0
      %893 = vmatprep.subr.mxu0 0.0
      %894 = vmatpush1.msra.mxu0 0.0
      %895 = vmatprep.subr.mxu0 0.0
      %896 = vmatpush1.msra.mxu0 0.0
      %897 = vmatprep.subr.mxu0 0.0
      %898 = vmatpush1.msra.mxu0 0.0
      %899 = vmatprep.subr.mxu0 0.0
      %900 = vmatpush1.msra.mxu0 0.0
      %901 = vmatprep.subr.mxu0 0.0
      %902 = vmatpush1.msra.mxu0 0.0
      %903 = vmatprep.subr.mxu0 0.0
      %904 = vmatpush1.msra.mxu0 0.0
      %905 = vmatprep.subr.mxu0 0.0
      %906 = vmatpush1.msra.mxu0 0.0
      %907 = vmatprep.subr.mxu0 0.0
      %908 = vmatpush1.msra.mxu0 0.0
      %909 = vmatprep.subr.mxu0 0.0
      %910 = vmatpush1.msra.mxu0 0.0
      %911 = vmatprep.subr.mxu0 0.0
      %912 = vmatpush1.msra.mxu0 0.0
      %913 = vmatprep.subr.mxu0 0.0
      %914 = vmatpush1.msra.mxu0 0.0
      %915 = vmatprep.subr.mxu0 0.0
      %916 = vmatpush1.msra.mxu0 0.0
      %917 = vmatprep.subr.mxu0 0.0
      %918 = vmatpush1.msra.mxu0 0.0
      %919 = vmatprep.subr.mxu0 0.0
      %920 = vmatpush1.msra.mxu0 0.0
      %921 = vmatprep.subr.mxu0 0.0
      %922 = vmatpush1.msra.mxu0 0.0
      %923 = vmatprep.mubr.f32.mxu0 0.0
      %924 = vmatmul.mubr.f32.gmra.mrb[0].mxu0 %v760
      %v925 = vpop.f32.mrb[0].mxu0
      %v926 = vadd.f32 0.0, %v925
      %v927 = vpop.f32.mrb[0].mxu0
      %928 = vmatprep.mubr.f32.mxu0 0.0
      %929 = vmatmul.mubr.f32.gmra.mrb[0].mxu0 %v763
      %v930 = vpop.f32.mrb[0].mxu0
      %v931 = vadd.f32 0.0, %v930
      %v932 = vpop.f32.mrb[0].mxu0
      %933 = vmatprep.mubr.f32.mxu0 0.0
      %934 = vmatmul.mubr.f32.gmra.mrb[0].mxu0 %v766
      %v935 = vpop.f32.mrb[0].mxu0
      %v936 = vadd.f32 0.0, %v935
      %v937 = vpop.f32.mrb[0].mxu0
      %938 = vmatprep.mubr.f32.mxu0 0.0
      %939 = vmatmul.mubr.f32.gmra.mrb[0].mxu0 %v769
      %v940 = vpop.f32.mrb[0].mxu0
      %v941 = vadd.f32 0.0, %v940
      %v942 = vpop.f32.mrb[0].mxu0
      %943 = vmatprep.mubr.f32.mxu0 0.0
      %944 = vmatmul.mubr.f32.gmra.mrb[0].mxu0 %v772
      %v945 = vpop.f32.mrb[0].mxu0
      %v946 = vadd.f32 0.0, %v945
      %v947 = vpop.f32.mrb[0].mxu0
      %948 = vmatprep.mubr.f32.mxu0 0.0
      %949 = vmatmul.mubr.f32.gmra.mrb[0].mxu0 %v775
      %v950 = vpop.f32.mrb[0].mxu0
      %v951 = vadd.f32 0.0, %v950
      %v952 = vpop.f32.mrb[0].mxu0
      %953 = vmatprep.mubr.f32.mxu0 0.0
      %954 = vmatmul.mubr.f32.gmra.mrb[0].mxu0 %v778
      %v955 = vpop.f32.mrb[0].mxu0
      %v956 = vadd.f32 0.0, %v955
      %v957 = vpop.f32.mrb[0].mxu0
      %958 = vmatprep.mubr.f32.mxu0 0.0
      %959 = vmatmul.mubr.f32.gmra.mrb[0].mxu0 %v781
      %v960 = vpop.f32.mrb[0].mxu0
      %v961 = vadd.f32 0.0, %v960
      %v962 = vpop.f32.mrb[0].mxu0
      %963 = vmatprep.mubr.f32.mxu0 0.0
      %964 = vmatmul.mubr.f32.gmra.mrb[0].mxu0 %v784
      %v965 = vpop.f32.mrb[0].mxu0
      %v966 = vadd.f32 0.0, %v965
      %v967 = vpop.f32.mrb[0].mxu0
      %968 = vmatprep.mubr.f32.mxu0 0.0
      %969 = vmatmul.mubr.f32.gmra.mrb[0].mxu0 %v787
      %v970 = vpop.f32.mrb[0].mxu0
      %v971 = vadd.f32 0.0, %v970
      %v972 = vpop.f32.mrb[0].mxu0
      %973 = vmatprep.mubr.f32.mxu0 0.0
      %974 = vmatmul.mubr.f32.gmra.mrb[0].mxu0 %v790
      %v975 = vpop.f32.mrb[0].mxu0
      %v976 = vadd.f32 0.0, %v975
      %v977 = vpop.f32.mrb[0].mxu0
      %978 = vmatprep.mubr.f32.mxu0 0.0
      %979 = vmatmul.mubr.f32.gmra.mrb[0].mxu0 %v793
      %v980 = vpop.f32.mrb[0].mxu0
      %v981 = vadd.f32 0.0, %v980
      %v982 = vpop.f32.mrb[0].mxu0
      %983 = vmatprep.mubr.f32.mxu0 0.0
      %984 = vmatmul.mubr.f32.gmra.mrb[0].mxu0 %v796
      %v985 = vpop.f32.mrb[0].mxu0
      %v986 = vadd.f32 0.0, %v985
      %v987 = vpop.f32.mrb[0].mxu0
      %988 = vmatprep.mubr.f32.mxu0 0.0
      %989 = vmatmul.mubr.f32.gmra.mrb[0].mxu0 %v799
      %v990 = vpop.f32.mrb[0].mxu0
      %v991 = vadd.f32 0.0, %v990
      %v992 = vpop.f32.mrb[0].mxu0
      %993 = vmatprep.mubr.f32.mxu0 0.0
      %994 = vmatmul.mubr.f32.gmra.mrb[0].mxu0 %v802
      %v995 = vpop.f32.mrb[0].mxu0
      %v996 = vadd.f32 0.0, %v995
      %v997 = vpop.f32.mrb[0].mxu0
      %998 = vmatprep.mubr.f32.mxu0 0.0
      %999 = vmatmul.mubr.f32.gmra.mrb[0].mxu0 %v805
      %v1000 = vpop.f32.mrb[0].mxu0
      %v1001 = vadd.f32 0.0, %v1000
      %v1002 = vpop.f32.mrb[0].mxu0
      %1003 = vmatprep.mubr.f32.mxu0 0.0
      %1004 = vmatmul.mubr.f32.gmra.mrb[0].mxu0 %v808
      %v1005 = vpop.f32.mrb[0].mxu0
      %v1006 = vadd.f32 0.0, %v1005
      %v1007 = vpop.f32.mrb[0].mxu0
      %1008 = vmatprep.mubr.f32.mxu0 0.0
      %1009 = vmatmul.mubr.f32.gmra.mrb[0].mxu0 %v811
      %v1010 = vpop.f32.mrb[0].mxu0
      %v1011 = vadd.f32 0.0, %v1010
      %v1012 = vpop.f32.mrb[0].mxu0
      %1013 = vmatprep.mubr.f32.mxu0 0.0
      %1014 = vmatmul.mubr.f32.gmra.mrb[0].mxu0 %v814
      %v1015 = vpop.f32.mrb[0].mxu0
      %v1016 = vadd.f32 0.0, %v1015
      %v1017 = vpop.f32.mrb[0].mxu0
      %1018 = vmatprep.mubr.f32.mxu0 0.0
      %1019 = vmatmul.mubr.f32.gmra.mrb[0].mxu0 %v817
      %v1020 = vpop.f32.mrb[0].mxu0
      %v1021 = vadd.f32 0.0, %v1020
      %v1022 = vpop.f32.mrb[0].mxu0
      %1023 = vmatprep.mubr.f32.mxu0 0.0
      %1024 = vmatmul.mubr.f32.gmra.mrb[0].mxu0 %v820
      %v1025 = vpop.f32.mrb[0].mxu0
      %v1026 = vadd.f32 0.0, %v1025
      %v1027 = vpop.f32.mrb[0].mxu0
      %1028 = vmatprep.mubr.f32.mxu0 0.0
      %1029 = vmatmul.mubr.f32.gmra.mrb[0].mxu0 %v823
      %v1030 = vpop.f32.mrb[0].mxu0
      %v1031 = vadd.f32 0.0, %v1030
      %v1032 = vpop.f32.mrb[0].mxu0
      %1033 = vmatprep.mubr.f32.mxu0 0.0
      %1034 = vmatmul.mubr.f32.gmra.mrb[0].mxu0 %v826
      %v1035 = vpop.f32.mrb[0].mxu0
      %v1036 = vadd.f32 0.0, %v1035
      %v1037 = vpop.f32.mrb[0].mxu0
      %1038 = vmatprep.mubr.f32.mxu0 0.0
      %1039 = vmatmul.mubr.f32.gmra.mrb[0].mxu0 %v829
      %v1040 = vpop.f32.mrb[0].mxu0
      %v1041 = vadd.f32 0.0, %v1040
      %v1042 = vpop.f32.mrb[0].mxu0
      %1043 = vmatprep.mubr.f32.mxu0 0.0
      %1044 = vmatmul.mubr.f32.gmra.mrb[0].mxu0 %v832
      %v1045 = vpop.f32.mrb[0].mxu0
      %v1046 = vadd.f32 0.0, %v1045
      %v1047 = vpop.f32.mrb[0].mxu0
      %1048 = vmatprep.mubr.f32.mxu0 0.0
      %1049 = vmatmul.mubr.f32.gmra.mrb[0].mxu0 %v835
      %v1050 = vpop.f32.mrb[0].mxu0
      %v1051 = vadd.f32 0.0, %v1050
      %v1052 = vpop.f32.mrb[0].mxu0
      %1053 = vmatprep.mubr.f32.mxu0 0.0
      %1054 = vmatmul.mubr.f32.gmra.mrb[0].mxu0 %v838
      %v1055 = vpop.f32.mrb[0].mxu0
      %v1056 = vadd.f32 0.0, %v1055
      %v1057 = vpop.f32.mrb[0].mxu0
      %1058 = vmatprep.mubr.f32.mxu0 0.0
      %1059 = vmatmul.mubr.f32.gmra.mrb[0].mxu0 %v841
      %v1060 = vpop.f32.mrb[0].mxu0
      %v1061 = vadd.f32 0.0, %v1060
      %v1062 = vpop.f32.mrb[0].mxu0
      %1063 = vmatprep.mubr.f32.mxu0 0.0
      %1064 = vmatmul.mubr.f32.gmra.mrb[0].mxu0 %v844
      %v1065 = vpop.f32.mrb[0].mxu0
      %v1066 = vadd.f32 0.0, %v1065
      %v1067 = vpop.f32.mrb[0].mxu0
      %1068 = vmatprep.mubr.f32.mxu0 0.0
      %1069 = vmatmul.mubr.f32.gmra.mrb[0].mxu0 %v847
      %v1070 = vpop.f32.mrb[0].mxu0
      %v1071 = vadd.f32 0.0, %v1070
      %v1072 = vpop.f32.mrb[0].mxu0
      %1073 = vmatprep.mubr.f32.mxu0 0.0
      %1074 = vmatmul.mubr.f32.gmra.mrb[0].mxu0 %v850
      %v1075 = vpop.f32.mrb[0].mxu0
      %v1076 = vadd.f32 0.0, %v1075
      %v1077 = vpop.f32.mrb[0].mxu0
      %1078 = vmatprep.mubr.f32.mxu0 0.0
      %1079 = vmatmul.mubr.f32.gmra.mrb[0].mxu0 %v853
      %v1080 = vpop.f32.mrb[0].mxu0
      %v1081 = vadd.f32 0.0, %v1080
      %v1082 = vpop.f32.mrb[0].mxu0
      %1083 = vdwg.mxu0
      %v1085 = vsel %vm758, %v719, 0
      %v1088 = vsel %vm758, %v720, 0
      %v1091 = vsel %vm855, %v754, 0
      %1093 = vmatprep.subr.mxu0 0.0
      %1094 = vmatpush1.msra.mxu0 %v753
      %1095 = vmatprep.subr.mxu0 0.0
      %1096 = vmatpush1.msra.mxu0 %v1091
      %1097 = vmatprep.subr.mxu0 0.0
      %1098 = vmatpush1.msra.mxu0 0.0
      %1099 = vmatprep.subr.mxu0 0.0
      %1100 = vmatpush1.msra.mxu0 0.0
      %1101 = vmatprep.subr.mxu0 0.0
      %1102 = vmatpush1.msra.mxu0 0.0
      %1103 = vmatprep.subr.mxu0 0.0
      %1104 = vmatpush1.msra.mxu0 0.0
      %1105 = vmatprep.subr.mxu0 0.0
      %1106 = vmatpush1.msra.mxu0 0.0
      %1107 = vmatprep.subr.mxu0 0.0
      %1108 = vmatpush1.msra.mxu0 0.0
      %1109 = vmatprep.subr.mxu0 0.0
      %1110 = vmatpush1.msra.mxu0 0.0
      %1111 = vmatprep.subr.mxu0 0.0
      %1112 = vmatpush1.msra.mxu0 0.0
      %1113 = vmatprep.subr.mxu0 0.0
      %1114 = vmatpush1.msra.mxu0 0.0
      %1115 = vmatprep.subr.mxu0 0.0
      %1116 = vmatpush1.msra.mxu0 0.0
      %1117 = vmatprep.subr.mxu0 0.0
      %1118 = vmatpush1.msra.mxu0 0.0
      %1119 = vmatprep.subr.mxu0 0.0
      %1120 = vmatpush1.msra.mxu0 0.0
      %1121 = vmatprep.subr.mxu0 0.0
      %1122 = vmatpush1.msra.mxu0 0.0
      %1123 = vmatprep.subr.mxu0 0.0
      %1124 = vmatpush1.msra.mxu0 0.0
      %1125 = vmatprep.subr.mxu0 0.0
      %1126 = vmatpush1.msra.mxu0 0.0
      %1127 = vmatprep.subr.mxu0 0.0
      %1128 = vmatpush1.msra.mxu0 0.0
      %1129 = vmatprep.subr.mxu0 0.0
      %1130 = vmatpush1.msra.mxu0 0.0
      %1131 = vmatprep.subr.mxu0 0.0
      %1132 = vmatpush1.msra.mxu0 0.0
      %1133 = vmatprep.subr.mxu0 0.0
      %1134 = vmatpush1.msra.mxu0 0.0
      %1135 = vmatprep.subr.mxu0 0.0
      %1136 = vmatpush1.msra.mxu0 0.0
      %1137 = vmatprep.subr.mxu0 0.0
      %1138 = vmatpush1.msra.mxu0 0.0
      %1139 = vmatprep.subr.mxu0 0.0
      %1140 = vmatpush1.msra.mxu0 0.0
      %1141 = vmatprep.subr.mxu0 0.0
      %1142 = vmatpush1.msra.mxu0 0.0
      %1143 = vmatprep.subr.mxu0 0.0
      %1144 = vmatpush1.msra.mxu0 0.0
      %1145 = vmatprep.subr.mxu0 0.0
      %1146 = vmatpush1.msra.mxu0 0.0
      %1147 = vmatprep.subr.mxu0 0.0
      %1148 = vmatpush1.msra.mxu0 0.0
      %1149 = vmatprep.subr.mxu0 0.0
      %1150 = vmatpush1.msra.mxu0 0.0
      %1151 = vmatprep.subr.mxu0 0.0
      %1152 = vmatpush1.msra.mxu0 0.0
      %1153 = vmatprep.subr.mxu0 0.0
      %1154 = vmatpush1.msra.mxu0 0.0
      %1155 = vmatprep.subr.mxu0 0.0
      %1156 = vmatpush1.msra.mxu0 0.0
      %1157 = vmatprep.mubr.f32.mxu0 0.0
      %1158 = vmatmul.mubr.f32.gmra.mrb[0].mxu0 %v1085
      %v1159 = vpop.f32.mrb[0].mxu0
      %v1160 = vadd.f32 %v926, %v1159
      %v1161 = vpop.f32.mrb[0].mxu0
      %1162 = vmatprep.mubr.f32.mxu0 0.0
      %1163 = vmatmul.mubr.f32.gmra.mrb[0].mxu0 %v1088
      %v1164 = vpop.f32.mrb[0].mxu0
      %v1165 = vadd.f32 %v931, %v1164
      %v1166 = vpop.f32.mrb[0].mxu0
      %1167 = vmatprep.mubr.f32.mxu0 0.0
      %1168 = vmatmul.mubr.f32.gmra.mrb[0].mxu0 %v760
      %v1169 = vpop.f32.mrb[0].mxu0
      %v1170 = vadd.f32 %v936, %v1169
      %v1171 = vpop.f32.mrb[0].mxu0
      %1172 = vmatprep.mubr.f32.mxu0 0.0
      %1173 = vmatmul.mubr.f32.gmra.mrb[0].mxu0 %v763
      %v1174 = vpop.f32.mrb[0].mxu0
      %v1175 = vadd.f32 %v941, %v1174
      %v1176 = vpop.f32.mrb[0].mxu0
      %1177 = vmatprep.mubr.f32.mxu0 0.0
      %1178 = vmatmul.mubr.f32.gmra.mrb[0].mxu0 %v766
      %v1179 = vpop.f32.mrb[0].mxu0
      %v1180 = vadd.f32 %v946, %v1179
      %v1181 = vpop.f32.mrb[0].mxu0
      %1182 = vmatprep.mubr.f32.mxu0 0.0
      %1183 = vmatmul.mubr.f32.gmra.mrb[0].mxu0 %v769
      %v1184 = vpop.f32.mrb[0].mxu0
      %v1185 = vadd.f32 %v951, %v1184
      %v1186 = vpop.f32.mrb[0].mxu0
      %1187 = vmatprep.mubr.f32.mxu0 0.0
      %1188 = vmatmul.mubr.f32.gmra.mrb[0].mxu0 %v772
      %v1189 = vpop.f32.mrb[0].mxu0
      %v1190 = vadd.f32 %v956, %v1189
      %v1191 = vpop.f32.mrb[0].mxu0
      %1192 = vmatprep.mubr.f32.mxu0 0.0
      %1193 = vmatmul.mubr.f32.gmra.mrb[0].mxu0 %v775
      %v1194 = vpop.f32.mrb[0].mxu0
      %v1195 = vadd.f32 %v961, %v1194
      %v1196 = vpop.f32.mrb[0].mxu0
      %1197 = vmatprep.mubr.f32.mxu0 0.0
      %1198 = vmatmul.mubr.f32.gmra.mrb[0].mxu0 %v778
      %v1199 = vpop.f32.mrb[0].mxu0
      %v1200 = vadd.f32 %v966, %v1199
      %v1201 = vpop.f32.mrb[0].mxu0
      %1202 = vmatprep.mubr.f32.mxu0 0.0
      %1203 = vmatmul.mubr.f32.gmra.mrb[0].mxu0 %v781
      %v1204 = vpop.f32.mrb[0].mxu0
      %v1205 = vadd.f32 %v971, %v1204
      %v1206 = vpop.f32.mrb[0].mxu0
      %1207 = vmatprep.mubr.f32.mxu0 0.0
      %1208 = vmatmul.mubr.f32.gmra.mrb[0].mxu0 %v784
      %v1209 = vpop.f32.mrb[0].mxu0
      %v1210 = vadd.f32 %v976, %v1209
      %v1211 = vpop.f32.mrb[0].mxu0
      %1212 = vmatprep.mubr.f32.mxu0 0.0
      %1213 = vmatmul.mubr.f32.gmra.mrb[0].mxu0 %v787
      %v1214 = vpop.f32.mrb[0].mxu0
      %v1215 = vadd.f32 %v981, %v1214
      %v1216 = vpop.f32.mrb[0].mxu0
      %1217 = vmatprep.mubr.f32.mxu0 0.0
      %1218 = vmatmul.mubr.f32.gmra.mrb[0].mxu0 %v790
      %v1219 = vpop.f32.mrb[0].mxu0
      %v1220 = vadd.f32 %v986, %v1219
      %v1221 = vpop.f32.mrb[0].mxu0
      %1222 = vmatprep.mubr.f32.mxu0 0.0
      %1223 = vmatmul.mubr.f32.gmra.mrb[0].mxu0 %v793
      %v1224 = vpop.f32.mrb[0].mxu0
      %v1225 = vadd.f32 %v991, %v1224
      %v1226 = vpop.f32.mrb[0].mxu0
      %1227 = vmatprep.mubr.f32.mxu0 0.0
      %1228 = vmatmul.mubr.f32.gmra.mrb[0].mxu0 %v796
      %v1229 = vpop.f32.mrb[0].mxu0
      %v1230 = vadd.f32 %v996, %v1229
      %v1231 = vpop.f32.mrb[0].mxu0
      %1232 = vmatprep.mubr.f32.mxu0 0.0
      %1233 = vmatmul.mubr.f32.gmra.mrb[0].mxu0 %v799
      %v1234 = vpop.f32.mrb[0].mxu0
      %v1235 = vadd.f32 %v1001, %v1234
      %v1236 = vpop.f32.mrb[0].mxu0
      %1237 = vmatprep.mubr.f32.mxu0 0.0
      %1238 = vmatmul.mubr.f32.gmra.mrb[0].mxu0 %v802
      %v1239 = vpop.f32.mrb[0].mxu0
      %v1240 = vadd.f32 %v1006, %v1239
      %v1241 = vpop.f32.mrb[0].mxu0
      %1242 = vmatprep.mubr.f32.mxu0 0.0
      %1243 = vmatmul.mubr.f32.gmra.mrb[0].mxu0 %v805
      %v1244 = vpop.f32.mrb[0].mxu0
      %v1245 = vadd.f32 %v1011, %v1244
      %v1246 = vpop.f32.mrb[0].mxu0
      %1247 = vmatprep.mubr.f32.mxu0 0.0
      %1248 = vmatmul.mubr.f32.gmra.mrb[0].mxu0 %v808
      %v1249 = vpop.f32.mrb[0].mxu0
      %v1250 = vadd.f32 %v1016, %v1249
      %v1251 = vpop.f32.mrb[0].mxu0
      %1252 = vmatprep.mubr.f32.mxu0 0.0
      %1253 = vmatmul.mubr.f32.gmra.mrb[0].mxu0 %v811
      %v1254 = vpop.f32.mrb[0].mxu0
      %v1255 = vadd.f32 %v1021, %v1254
      %v1256 = vpop.f32.mrb[0].mxu0
      %1257 = vmatprep.mubr.f32.mxu0 0.0
      %1258 = vmatmul.mubr.f32.gmra.mrb[0].mxu0 %v814
      %v1259 = vpop.f32.mrb[0].mxu0
      %v1260 = vadd.f32 %v1026, %v1259
      %v1261 = vpop.f32.mrb[0].mxu0
      %1262 = vmatprep.mubr.f32.mxu0 0.0
      %1263 = vmatmul.mubr.f32.gmra.mrb[0].mxu0 %v817
      %v1264 = vpop.f32.mrb[0].mxu0
      %v1265 = vadd.f32 %v1031, %v1264
      %v1266 = vpop.f32.mrb[0].mxu0
      %1267 = vmatprep.mubr.f32.mxu0 0.0
      %1268 = vmatmul.mubr.f32.gmra.mrb[0].mxu0 %v820
      %v1269 = vpop.f32.mrb[0].mxu0
      %v1270 = vadd.f32 %v1036, %v1269
      %v1271 = vpop.f32.mrb[0].mxu0
      %1272 = vmatprep.mubr.f32.mxu0 0.0
      %1273 = vmatmul.mubr.f32.gmra.mrb[0].mxu0 %v823
      %v1274 = vpop.f32.mrb[0].mxu0
      %v1275 = vadd.f32 %v1041, %v1274
      %v1276 = vpop.f32.mrb[0].mxu0
      %1277 = vmatprep.mubr.f32.mxu0 0.0
      %1278 = vmatmul.mubr.f32.gmra.mrb[0].mxu0 %v826
      %v1279 = vpop.f32.mrb[0].mxu0
      %v1280 = vadd.f32 %v1046, %v1279
      %v1281 = vpop.f32.mrb[0].mxu0
      %1282 = vmatprep.mubr.f32.mxu0 0.0
      %1283 = vmatmul.mubr.f32.gmra.mrb[0].mxu0 %v829
      %v1284 = vpop.f32.mrb[0].mxu0
      %v1285 = vadd.f32 %v1051, %v1284
      %v1286 = vpop.f32.mrb[0].mxu0
      %1287 = vmatprep.mubr.f32.mxu0 0.0
      %1288 = vmatmul.mubr.f32.gmra.mrb[0].mxu0 %v832
      %v1289 = vpop.f32.mrb[0].mxu0
      %v1290 = vadd.f32 %v1056, %v1289
      %v1291 = vpop.f32.mrb[0].mxu0
      %1292 = vmatprep.mubr.f32.mxu0 0.0
      %1293 = vmatmul.mubr.f32.gmra.mrb[0].mxu0 %v835
      %v1294 = vpop.f32.mrb[0].mxu0
      %v1295 = vadd.f32 %v1061, %v1294
      %v1296 = vpop.f32.mrb[0].mxu0
      %1297 = vmatprep.mubr.f32.mxu0 0.0
      %1298 = vmatmul.mubr.f32.gmra.mrb[0].mxu0 %v838
      %v1299 = vpop.f32.mrb[0].mxu0
      %v1300 = vadd.f32 %v1066, %v1299
      %v1301 = vpop.f32.mrb[0].mxu0
      %1302 = vmatprep.mubr.f32.mxu0 0.0
      %1303 = vmatmul.mubr.f32.gmra.mrb[0].mxu0 %v841
      %v1304 = vpop.f32.mrb[0].mxu0
      %v1305 = vadd.f32 %v1071, %v1304
      %v1306 = vpop.f32.mrb[0].mxu0
      %1307 = vmatprep.mubr.f32.mxu0 0.0
      %1308 = vmatmul.mubr.f32.gmra.mrb[0].mxu0 %v844
      %v1309 = vpop.f32.mrb[0].mxu0
      %v1310 = vadd.f32 %v1076, %v1309
      %v1311 = vpop.f32.mrb[0].mxu0
      %1312 = vmatprep.mubr.f32.mxu0 0.0
      %1313 = vmatmul.mubr.f32.gmra.mrb[0].mxu0 %v847
      %v1314 = vpop.f32.mrb[0].mxu0
      %v1315 = vadd.f32 %v1081, %v1314
      %v1316 = vpop.f32.mrb[0].mxu0
      %1317 = vdwg.mxu0
      %s1318 = scalar_lea.vmem %s1, 32
      %v1319 = vld [vmem:[%s1318] sm:$0xff]
      %v1320 = vld [vmem:[%s1318 + $0x8] sm:$0xf]
      %v1322 = vsel %vm855, %v1320, 0
      %1324 = vmatprep.subr.mxu0 0.0
      %1325 = vmatpush1.msra.mxu0 %v1319
      %1326 = vmatprep.subr.mxu0 0.0
      %1327 = vmatpush1.msra.mxu0 %v1322
      %1328 = vmatprep.subr.mxu0 0.0
      %1329 = vmatpush1.msra.mxu0 0.0
      %1330 = vmatprep.subr.mxu0 0.0
      %1331 = vmatpush1.msra.mxu0 0.0
      %1332 = vmatprep.subr.mxu0 0.0
      %1333 = vmatpush1.msra.mxu0 0.0
      %1334 = vmatprep.subr.mxu0 0.0
      %1335 = vmatpush1.msra.mxu0 0.0
      %1336 = vmatprep.subr.mxu0 0.0
      %1337 = vmatpush1.msra.mxu0 0.0
      %1338 = vmatprep.subr.mxu0 0.0
      %1339 = vmatpush1.msra.mxu0 0.0
      %1340 = vmatprep.subr.mxu0 0.0
      %1341 = vmatpush1.msra.mxu0 0.0
      %1342 = vmatprep.subr.mxu0 0.0
      %1343 = vmatpush1.msra.mxu0 0.0
      %1344 = vmatprep.subr.mxu0 0.0
      %1345 = vmatpush1.msra.mxu0 0.0
      %1346 = vmatprep.subr.mxu0 0.0
      %1347 = vmatpush1.msra.mxu0 0.0
      %1348 = vmatprep.subr.mxu0 0.0
      %1349 = vmatpush1.msra.mxu0 0.0
      %1350 = vmatprep.subr.mxu0 0.0
      %1351 = vmatpush1.msra.mxu0 0.0
      %1352 = vmatprep.subr.mxu0 0.0
      %1353 = vmatpush1.msra.mxu0 0.0
      %1354 = vmatprep.subr.mxu0 0.0
      %1355 = vmatpush1.msra.mxu0 0.0
      %1356 = vmatprep.subr.mxu0 0.0
      %1357 = vmatpush1.msra.mxu0 0.0
      %1358 = vmatprep.subr.mxu0 0.0
      %1359 = vmatpush1.msra.mxu0 0.0
      %1360 = vmatprep.subr.mxu0 0.0
      %1361 = vmatpush1.msra.mxu0 0.0
      %1362 = vmatprep.subr.mxu0 0.0
      %1363 = vmatpush1.msra.mxu0 0.0
      %1364 = vmatprep.subr.mxu0 0.0
      %1365 = vmatpush1.msra.mxu0 0.0
      %1366 = vmatprep.subr.mxu0 0.0
      %1367 = vmatpush1.msra.mxu0 0.0
      %1368 = vmatprep.subr.mxu0 0.0
      %1369 = vmatpush1.msra.mxu0 0.0
      %1370 = vmatprep.subr.mxu0 0.0
      %1371 = vmatpush1.msra.mxu0 0.0
      %1372 = vmatprep.subr.mxu0 0.0
      %1373 = vmatpush1.msra.mxu0 0.0
      %1374 = vmatprep.subr.mxu0 0.0
      %1375 = vmatpush1.msra.mxu0 0.0
      %1376 = vmatprep.subr.mxu0 0.0
      %1377 = vmatpush1.msra.mxu0 0.0
      %1378 = vmatprep.subr.mxu0 0.0
      %1379 = vmatpush1.msra.mxu0 0.0
      %1380 = vmatprep.subr.mxu0 0.0
      %1381 = vmatpush1.msra.mxu0 0.0
      %1382 = vmatprep.subr.mxu0 0.0
      %1383 = vmatpush1.msra.mxu0 0.0
      %1384 = vmatprep.subr.mxu0 0.0
      %1385 = vmatpush1.msra.mxu0 0.0
      %1386 = vmatprep.subr.mxu0 0.0
      %1387 = vmatpush1.msra.mxu0 0.0
      %1388 = vmatprep.mubr.f32.mxu0 0.0
      %1389 = vmatmul.mubr.f32.gmra.mrb[0].mxu0 %v766
      %v1390 = vpop.f32.mrb[0].mxu0
      %v1391 = vadd.f32 0.0, %v1390
      %v1392 = vpop.f32.mrb[0].mxu0
      %1393 = vmatprep.mubr.f32.mxu0 0.0
      %1394 = vmatmul.mubr.f32.gmra.mrb[0].mxu0 %v769
      %v1395 = vpop.f32.mrb[0].mxu0
      %v1396 = vadd.f32 0.0, %v1395
      %v1397 = vpop.f32.mrb[0].mxu0
      %1398 = vmatprep.mubr.f32.mxu0 0.0
      %1399 = vmatmul.mubr.f32.gmra.mrb[0].mxu0 %v772
      %v1400 = vpop.f32.mrb[0].mxu0
      %v1401 = vadd.f32 0.0, %v1400
      %v1402 = vpop.f32.mrb[0].mxu0
      %1403 = vmatprep.mubr.f32.mxu0 0.0
      %1404 = vmatmul.mubr.f32.gmra.mrb[0].mxu0 %v775
      %v1405 = vpop.f32.mrb[0].mxu0
      %v1406 = vadd.f32 0.0, %v1405
      %v1407 = vpop.f32.mrb[0].mxu0
      %1408 = vmatprep.mubr.f32.mxu0 0.0
      %1409 = vmatmul.mubr.f32.gmra.mrb[0].mxu0 %v778
      %v1410 = vpop.f32.mrb[0].mxu0
      %v1411 = vadd.f32 0.0, %v1410
      %v1412 = vpop.f32.mrb[0].mxu0
      %1413 = vmatprep.mubr.f32.mxu0 0.0
      %1414 = vmatmul.mubr.f32.gmra.mrb[0].mxu0 %v781
      %v1415 = vpop.f32.mrb[0].mxu0
      %v1416 = vadd.f32 0.0, %v1415
      %v1417 = vpop.f32.mrb[0].mxu0
      %1418 = vmatprep.mubr.f32.mxu0 0.0
      %1419 = vmatmul.mubr.f32.gmra.mrb[0].mxu0 %v784
      %v1420 = vpop.f32.mrb[0].mxu0
      %v1421 = vadd.f32 0.0, %v1420
      %v1422 = vpop.f32.mrb[0].mxu0
      %1423 = vmatprep.mubr.f32.mxu0 0.0
      %1424 = vmatmul.mubr.f32.gmra.mrb[0].mxu0 %v787
      %v1425 = vpop.f32.mrb[0].mxu0
      %v1426 = vadd.f32 0.0, %v1425
      %v1427 = vpop.f32.mrb[0].mxu0
      %1428 = vmatprep.mubr.f32.mxu0 0.0
      %1429 = vmatmul.mubr.f32.gmra.mrb[0].mxu0 %v790
      %v1430 = vpop.f32.mrb[0].mxu0
      %v1431 = vadd.f32 0.0, %v1430
      %v1432 = vpop.f32.mrb[0].mxu0
      %1433 = vmatprep.mubr.f32.mxu0 0.0
      %1434 = vmatmul.mubr.f32.gmra.mrb[0].mxu0 %v793
      %v1435 = vpop.f32.mrb[0].mxu0
      %v1436 = vadd.f32 0.0, %v1435
      %v1437 = vpop.f32.mrb[0].mxu0
      %1438 = vmatprep.mubr.f32.mxu0 0.0
      %1439 = vmatmul.mubr.f32.gmra.mrb[0].mxu0 %v796
      %v1440 = vpop.f32.mrb[0].mxu0
      %v1441 = vadd.f32 0.0, %v1440
      %v1442 = vpop.f32.mrb[0].mxu0
      %1443 = vmatprep.mubr.f32.mxu0 0.0
      %1444 = vmatmul.mubr.f32.gmra.mrb[0].mxu0 %v799
      %v1445 = vpop.f32.mrb[0].mxu0
      %v1446 = vadd.f32 0.0, %v1445
      %v1447 = vpop.f32.mrb[0].mxu0
      %1448 = vmatprep.mubr.f32.mxu0 0.0
      %1449 = vmatmul.mubr.f32.gmra.mrb[0].mxu0 %v802
      %v1450 = vpop.f32.mrb[0].mxu0
      %v1451 = vadd.f32 0.0, %v1450
      %v1452 = vpop.f32.mrb[0].mxu0
      %1453 = vmatprep.mubr.f32.mxu0 0.0
      %1454 = vmatmul.mubr.f32.gmra.mrb[0].mxu0 %v805
      %v1455 = vpop.f32.mrb[0].mxu0
      %v1456 = vadd.f32 0.0, %v1455
      %v1457 = vpop.f32.mrb[0].mxu0
      %1458 = vmatprep.mubr.f32.mxu0 0.0
      %1459 = vmatmul.mubr.f32.gmra.mrb[0].mxu0 %v808
      %v1460 = vpop.f32.mrb[0].mxu0
      %v1461 = vadd.f32 0.0, %v1460
      %v1462 = vpop.f32.mrb[0].mxu0
      %1463 = vmatprep.mubr.f32.mxu0 0.0
      %1464 = vmatmul.mubr.f32.gmra.mrb[0].mxu0 %v811
      %v1465 = vpop.f32.mrb[0].mxu0
      %v1466 = vadd.f32 0.0, %v1465
      %v1467 = vpop.f32.mrb[0].mxu0
      %1468 = vmatprep.mubr.f32.mxu0 0.0
      %1469 = vmatmul.mubr.f32.gmra.mrb[0].mxu0 %v814
      %v1470 = vpop.f32.mrb[0].mxu0
      %v1471 = vadd.f32 0.0, %v1470
      %v1472 = vpop.f32.mrb[0].mxu0
      %1473 = vmatprep.mubr.f32.mxu0 0.0
      %1474 = vmatmul.mubr.f32.gmra.mrb[0].mxu0 %v817
      %v1475 = vpop.f32.mrb[0].mxu0
      %v1476 = vadd.f32 0.0, %v1475
      %v1477 = vpop.f32.mrb[0].mxu0
      %1478 = vmatprep.mubr.f32.mxu0 0.0
      %1479 = vmatmul.mubr.f32.gmra.mrb[0].mxu0 %v820
      %v1480 = vpop.f32.mrb[0].mxu0
      %v1481 = vadd.f32 0.0, %v1480
      %v1482 = vpop.f32.mrb[0].mxu0
      %1483 = vmatprep.mubr.f32.mxu0 0.0
      %1484 = vmatmul.mubr.f32.gmra.mrb[0].mxu0 %v823
      %v1485 = vpop.f32.mrb[0].mxu0
      %v1486 = vadd.f32 0.0, %v1485
      %v1487 = vpop.f32.mrb[0].mxu0
      %1488 = vmatprep.mubr.f32.mxu0 0.0
      %1489 = vmatmul.mubr.f32.gmra.mrb[0].mxu0 %v826
      %v1490 = vpop.f32.mrb[0].mxu0
      %v1491 = vadd.f32 0.0, %v1490
      %v1492 = vpop.f32.mrb[0].mxu0
      %1493 = vmatprep.mubr.f32.mxu0 0.0
      %1494 = vmatmul.mubr.f32.gmra.mrb[0].mxu0 %v829
      %v1495 = vpop.f32.mrb[0].mxu0
      %v1496 = vadd.f32 0.0, %v1495
      %v1497 = vpop.f32.mrb[0].mxu0
      %1498 = vmatprep.mubr.f32.mxu0 0.0
      %1499 = vmatmul.mubr.f32.gmra.mrb[0].mxu0 %v832
      %v1500 = vpop.f32.mrb[0].mxu0
      %v1501 = vadd.f32 0.0, %v1500
      %v1502 = vpop.f32.mrb[0].mxu0
      %1503 = vmatprep.mubr.f32.mxu0 0.0
      %1504 = vmatmul.mubr.f32.gmra.mrb[0].mxu0 %v835
      %v1505 = vpop.f32.mrb[0].mxu0
      %v1506 = vadd.f32 0.0, %v1505
      %v1507 = vpop.f32.mrb[0].mxu0
      %1508 = vmatprep.mubr.f32.mxu0 0.0
      %1509 = vmatmul.mubr.f32.gmra.mrb[0].mxu0 %v838
      %v1510 = vpop.f32.mrb[0].mxu0
      %v1511 = vadd.f32 0.0, %v1510
      %v1512 = vpop.f32.mrb[0].mxu0
      %1513 = vmatprep.mubr.f32.mxu0 0.0
      %1514 = vmatmul.mubr.f32.gmra.mrb[0].mxu0 %v841
      %v1515 = vpop.f32.mrb[0].mxu0
      %v1516 = vadd.f32 0.0, %v1515
      %v1517 = vpop.f32.mrb[0].mxu0
      %1518 = vmatprep.mubr.f32.mxu0 0.0
      %1519 = vmatmul.mubr.f32.gmra.mrb[0].mxu0 %v844
      %v1520 = vpop.f32.mrb[0].mxu0
      %v1521 = vadd.f32 0.0, %v1520
      %v1522 = vpop.f32.mrb[0].mxu0
      %1523 = vmatprep.mubr.f32.mxu0 0.0
      %1524 = vmatmul.mubr.f32.gmra.mrb[0].mxu0 %v847
      %v1525 = vpop.f32.mrb[0].mxu0
      %v1526 = vadd.f32 0.0, %v1525
      %v1527 = vpop.f32.mrb[0].mxu0
      %1528 = vmatprep.mubr.f32.mxu0 0.0
      %1529 = vmatmul.mubr.f32.gmra.mrb[0].mxu0 %v850
      %v1530 = vpop.f32.mrb[0].mxu0
      %v1531 = vadd.f32 0.0, %v1530
      %v1532 = vpop.f32.mrb[0].mxu0
      %1533 = vmatprep.mubr.f32.mxu0 0.0
      %1534 = vmatmul.mubr.f32.gmra.mrb[0].mxu0 %v853
      %v1535 = vpop.f32.mrb[0].mxu0
      %v1536 = vadd.f32 0.0, %v1535
      %v1537 = vpop.f32.mrb[0].mxu0
      %1538 = vmatprep.mubr.f32.mxu0 0.0
      %1539 = vmatmul.mubr.f32.gmra.mrb[0].mxu0 %v1085
      %v1540 = vpop.f32.mrb[0].mxu0
      %v1541 = vadd.f32 0.0, %v1540
      %v1542 = vpop.f32.mrb[0].mxu0
      %1543 = vmatprep.mubr.f32.mxu0 0.0
      %1544 = vmatmul.mubr.f32.gmra.mrb[0].mxu0 %v1088
      %v1545 = vpop.f32.mrb[0].mxu0
      %v1546 = vadd.f32 0.0, %v1545
      %v1547 = vpop.f32.mrb[0].mxu0
      %1548 = vdwg.mxu0
      %v1549 = vadd.f32 %v1160, %v1391
      %v1550 = vadd.f32 %v1165, %v1396
      %v1551 = vadd.f32 %v1170, %v1401
      %v1552 = vadd.f32 %v1175, %v1406
      %v1553 = vadd.f32 %v1180, %v1411
      %v1554 = vadd.f32 %v1185, %v1416
      %v1555 = vadd.f32 %v1190, %v1421
      %v1556 = vadd.f32 %v1195, %v1426
      %v1557 = vadd.f32 %v1200, %v1431
      %v1558 = vadd.f32 %v1205, %v1436
      %v1559 = vadd.f32 %v1210, %v1441
      %v1560 = vadd.f32 %v1215, %v1446
      %v1561 = vadd.f32 %v1220, %v1451
      %v1562 = vadd.f32 %v1225, %v1456
      %v1563 = vadd.f32 %v1230, %v1461
      %v1564 = vadd.f32 %v1235, %v1466
      %v1565 = vadd.f32 %v1240, %v1471
      %v1566 = vadd.f32 %v1245, %v1476
      %v1567 = vadd.f32 %v1250, %v1481
      %v1568 = vadd.f32 %v1255, %v1486
      %v1569 = vadd.f32 %v1260, %v1491
      %v1570 = vadd.f32 %v1265, %v1496
      %v1571 = vadd.f32 %v1270, %v1501
      %v1572 = vadd.f32 %v1275, %v1506
      %v1573 = vadd.f32 %v1280, %v1511
      %v1574 = vadd.f32 %v1285, %v1516
      %v1575 = vadd.f32 %v1290, %v1521
      %v1576 = vadd.f32 %v1295, %v1526
      %v1577 = vadd.f32 %v1300, %v1531
      %v1578 = vadd.f32 %v1305, %v1536
      %v1579 = vadd.f32 %v1310, %v1541
      %v1580 = vadd.f32 %v1315, %v1546
      %v1581 = vld [vmem:[%s2] sm:$0x1]
      %v1583 = vlaneseq
      %v1584 = vshrl.u32 %v1583, 7
      %v1585 = vsub.s32 0, %v1584
      %v1586 = vrot.slane %v1581, %v1585
      %v1588 = vadd.f32 %v1549, %v1586
      %v1589 = vadd.f32 %v1550, %v1586
      %v1590 = vadd.f32 %v1551, %v1586
      %v1591 = vadd.f32 %v1552, %v1586
      %v1592 = vadd.f32 %v1553, %v1586
      %v1593 = vadd.f32 %v1554, %v1586
      %v1594 = vadd.f32 %v1555, %v1586
      %v1595 = vadd.f32 %v1556, %v1586
      %v1596 = vadd.f32 %v1557, %v1586
      %v1597 = vadd.f32 %v1558, %v1586
      %v1598 = vadd.f32 %v1559, %v1586
      %v1599 = vadd.f32 %v1560, %v1586
      %v1600 = vadd.f32 %v1561, %v1586
      %v1601 = vadd.f32 %v1562, %v1586
      %v1602 = vadd.f32 %v1563, %v1586
      %v1603 = vadd.f32 %v1564, %v1586
      %v1604 = vadd.f32 %v1565, %v1586
      %v1605 = vadd.f32 %v1566, %v1586
      %v1606 = vadd.f32 %v1567, %v1586
      %v1607 = vadd.f32 %v1568, %v1586
      %v1608 = vadd.f32 %v1569, %v1586
      %v1609 = vadd.f32 %v1570, %v1586
      %v1610 = vadd.f32 %v1571, %v1586
      %v1611 = vadd.f32 %v1572, %v1586
      %v1612 = vadd.f32 %v1573, %v1586
      %v1613 = vadd.f32 %v1574, %v1586
      %v1614 = vadd.f32 %v1575, %v1586
      %v1615 = vadd.f32 %v1576, %v1586
      %v1616 = vadd.f32 %v1577, %v1586
      %v1617 = vadd.f32 %v1578, %v1586
      %v1618 = vadd.f32 %v1579, %v1586
      %v1619 = vadd.f32 %v1580, %v1586
      %v1620 = vadd.f32 %v1588, %v213
      %v1621 = vadd.f32 %v1589, %v214
      %v1622 = vadd.f32 %v1590, %v215
      %v1623 = vadd.f32 %v1591, %v216
      %v1624 = vadd.f32 %v1592, %v217
      %v1625 = vadd.f32 %v1593, %v218
      %v1626 = vadd.f32 %v1594, %v219
      %v1627 = vadd.f32 %v1595, %v220
      %v1628 = vadd.f32 %v1596, %v221
      %v1629 = vadd.f32 %v1597, %v222
      %v1630 = vadd.f32 %v1598, %v223
      %v1631 = vadd.f32 %v1599, %v224
      %v1632 = vadd.f32 %v1600, %v225
      %v1633 = vadd.f32 %v1601, %v226
      %v1634 = vadd.f32 %v1602, %v227
      %v1635 = vadd.f32 %v1603, %v228
      %v1636 = vadd.f32 %v1604, %v229
      %v1637 = vadd.f32 %v1605, %v230
      %v1638 = vadd.f32 %v1606, %v231
      %v1639 = vadd.f32 %v1607, %v232
      %v1640 = vadd.f32 %v1608, %v233
      %v1641 = vadd.f32 %v1609, %v234
      %v1642 = vadd.f32 %v1610, %v235
      %v1643 = vadd.f32 %v1611, %v236
      %v1644 = vadd.f32 %v1612, %v237
      %v1645 = vadd.f32 %v1613, %v238
      %v1646 = vadd.f32 %v1614, %v239
      %v1647 = vadd.f32 %v1615, %v240
      %v1648 = vadd.f32 %v1616, %v241
      %v1649 = vadd.f32 %v1617, %v242
      %v1650 = vadd.f32 %v1618, %v243
      %v1651 = vadd.f32 %v1619, %v244
      %1652 = vst.msk [vmem:[%s211] sm:$0xff] %vm683, %v1620
      %1653 = vst.msk [vmem:[%s211 + $0x8] sm:$0xff] %vm683, %v1621
      %1654 = vst.msk [vmem:[%s211 + $0x10] sm:$0xff] %vm683, %v1622
      %1655 = vst.msk [vmem:[%s211 + $0x18] sm:$0xff] %vm683, %v1623
      %1656 = vst.msk [vmem:[%s211 + $0x20] sm:$0xff] %vm683, %v1624
      %1657 = vst.msk [vmem:[%s211 + $0x28] sm:$0xff] %vm683, %v1625
      %1658 = vst.msk [vmem:[%s211 + $0x30] sm:$0xff] %vm683, %v1626
      %1659 = vst.msk [vmem:[%s211 + $0x38] sm:$0xff] %vm683, %v1627
      %1660 = vst.msk [vmem:[%s211 + $0x40] sm:$0xff] %vm683, %v1628
      %1661 = vst.msk [vmem:[%s211 + $0x48] sm:$0xff] %vm683, %v1629
      %1662 = vst.msk [vmem:[%s211 + $0x50] sm:$0xff] %vm683, %v1630
      %1663 = vst.msk [vmem:[%s211 + $0x58] sm:$0xff] %vm683, %v1631
      %1664 = vst.msk [vmem:[%s211 + $0x60] sm:$0xff] %vm683, %v1632
      %1665 = vst.msk [vmem:[%s211 + $0x68] sm:$0xff] %vm683, %v1633
      %1666 = vst.msk [vmem:[%s211 + $0x70] sm:$0xff] %vm683, %v1634
      %1667 = vst.msk [vmem:[%s211 + $0x78] sm:$0xff] %vm683, %v1635
      %1668 = vst.msk [vmem:[%s211 + $0x80] sm:$0xff] %vm683, %v1636
      %1669 = vst.msk [vmem:[%s211 + $0x88] sm:$0xff] %vm683, %v1637
      %1670 = vst.msk [vmem:[%s211 + $0x90] sm:$0xff] %vm683, %v1638
      %1671 = vst.msk [vmem:[%s211 + $0x98] sm:$0xff] %vm683, %v1639
      %1672 = vst.msk [vmem:[%s211 + $0xa0] sm:$0xff] %vm683, %v1640
      %1673 = vst.msk [vmem:[%s211 + $0xa8] sm:$0xff] %vm683, %v1641
      %1674 = vst.msk [vmem:[%s211 + $0xb0] sm:$0xff] %vm683, %v1642
      %1675 = vst.msk [vmem:[%s211 + $0xb8] sm:$0xff] %vm683, %v1643
      %1676 = vst.msk [vmem:[%s211 + $0xc0] sm:$0xff] %vm683, %v1644
      %1677 = vst.msk [vmem:[%s211 + $0xc8] sm:$0xff] %vm683, %v1645
      %1678 = vst.msk [vmem:[%s211 + $0xd0] sm:$0xff] %vm683, %v1646
      %1679 = vst.msk [vmem:[%s211 + $0xd8] sm:$0xff] %vm683, %v1647
      %1680 = vst.msk [vmem:[%s211 + $0xe0] sm:$0xff] %vm683, %v1648
      %1681 = vst.msk [vmem:[%s211 + $0xe8] sm:$0xff] %vm683, %v1649
      %1682 = vst.msk [vmem:[%s211 + $0xf0] sm:$0xff] %vm683, %v1650
      %1683 = vst.msk [vmem:[%s211 + $0xf8] sm:$0xff] %vm683, %v1651
      %s1684 = smul.u32 32, %s19
      %p1685 = scmp.lt.s32.totalorder %s18, 1
      %s1686 = scalar_select %p1685, %s18, 1
      %p1687 = scmp.lt.s32.totalorder %s1684, 31
      %s1688 = scalar_select %p1687, %s1684, 31
      %s1689 = smul.addr %s1686, 32
      %s1690 = sadd.s32 %s1688, %s1689
      %s1691 = smul.addr %s1690, 8
      %s1692 = scalar_lea.vmem %s3, %s1691
      // Predicated region
      $region33: #{residual_conv.1} parent=31 // pred_check
        %p1693 = pneg %p116
      $region34: #{residual_conv.1} parent=31 // pred_check_branch
        %1695 = sbr.rel (%p1693) target = $region36
      $region35: #{residual_conv.1} parent=31 // pred_region
        %s1696 = smul.u32 32, %s19
      $region36: #{residual_conv.1} parent=31 // pred_fallthru
        _
    $region32: #{residual_conv.1} parent=5 // pred_fallthru
      _
    %p1697 = scmp.le.s32.totalorder 2, %s9
    // Predicated region
    $region37: #{residual_conv.1} parent=5 // pred_check
      %p1698 = pneg %p1697
    $region38: #{residual_conv.1} parent=5 // pred_check_branch
      %1700 = sbr.rel (%p1698) target = $region40
    $region39: #{residual_conv.1} parent=5 // pred_region
      %s1701 = ssub.s32 %s9, 2
      // Predicated region
      $region41: #{residual_conv.1} parent=39 // pred_check
        %p1702 = pneg %p122
      $region42: #{residual_conv.1} parent=39 // pred_check_branch
        %1704 = sbr.rel (%p1702) target = $region44
      $region43: #{residual_conv.1} parent=39 // pred_region
        %s1705 = smul.u32 32, %s21
        %p1706 = scmp.lt.s32.totalorder %s20, 1
        %s1707 = scalar_select %p1706, %s20, 1
        %p1708 = scmp.lt.s32.totalorder %s1705, 31
        %s1709 = scalar_select %p1708, %s1705, 31
        %s1710 = smul.addr %s1707, 32
        %s1711 = sadd.s32 %s1709, %s1710
        %s1712 = smul.addr %s1711, 8
        %s1713 = scalar_lea.vmem %s3, %s1712
      $region44: #{residual_conv.1} parent=39 // pred_fallthru
        _
    $region40: #{residual_conv.1} parent=5 // pred_fallthru
      _
  $region6: #{residual_conv.1} parent=0 // loop_footer
    %s13 = sadd.s32 1, %s9
  $region7: #{residual_conv.1} parent=0 // loop_footer_branch
    %8 = sbr.rel target = $region3
  $region8: #{residual_conv.1} parent=0 // loop_exit
    _

</llo_original>
